<compile_context>
chip_gen: v7x
topology: tpu7x:2x2x1
jax: 0.10.0
libtpu: 0.0.40
codegen_flags: <defaults>
</compile_context>

<pallas_src>
import functools

import jax
import jax.numpy as jnp
from jax.experimental import pallas as pl
from jax.experimental.pallas import tpu as pltpu


def _concat_conv2d_kernel(x_ref, w_ref, c_ref, o_ref, *, ksize, width, chunk):
    # x_ref : VMEM (tb*H*W, Cin)           bf16  -- batch+spatial flattened activations
    # w_ref : VMEM (KH*KW, Cin, Cout_pad)  bf16  -- tap-major real-channel weights
    # c_ref : VMEM (1, Cout_pad)           f32   -- bias + t * sum_taps(w_t), lane-padded
    # o_ref : VMEM (tb*H*W, Cout_pad)      bf16/f32 -- lane-dense padded output slab
    total, cout_p = o_ref.shape
    halo = (ksize - 1) * width + (ksize - 1)     # last rows of the tile lack a halo
    m_total = total - halo                       # computable superset rows

    const = c_ref[...]                                       # (1, Cout_pad) f32
    # Hoist the tap weights once (tiny: KH*KW single-vreg loads).
    w_taps = [w_ref[tap] for tap in range(ksize * ksize)]    # each (Cin, Cout_pad) bf16

    # Static chunk loop (few iterations): keeps the f32 accumulator at <= chunk/8
    # vregs so nothing spills; all slice starts/sizes are static Python ints.
    start = 0
    while start < m_total:
        rows = min(chunk, m_total - start)
        # Folded t-channel/bias constant initializes the accumulator (one broadcast
        # per chunk instead of one add per image).
        acc = jnp.broadcast_to(const, (rows, cout_p))        # f32
        for kh in range(ksize):
            for kw in range(ksize):
                off = kh * width + kw                        # static sublane offset
                patch = x_ref[start + off:start + off + rows, :]   # (rows, Cin) bf16
                acc = acc + jnp.dot(patch, w_taps[kh * ksize + kw],
                                    preferred_element_type=jnp.float32)
        o_ref[start:start + rows, :] = acc.astype(o_ref.dtype)
        start += rows
    # Rows [m_total, total) are never read after the wrapper's slice -> left unwritten.


def _pick_batch_tile(B, HW, cout_pad, out_itemsize):
    """Largest batch tile with >= 2 grid steps, 8-aligned rows, a bounded static
    chunk unroll, and a double-buffered lane-padded VMEM footprint that fits v5e's
    16 MiB scoped default (so no vmem_limit override is needed on v5e/v6e/v7x)."""
    best = 1
    for cand in range(1, max(B // 2, 1) + 1):    # cand <= B//2  =>  >= 2 grid steps
        if B % cand:
            continue
        rows = cand * HW
        if rows % 8:
            continue
        if rows > 2048:                          # bounds in-kernel static unroll
            continue
        # Double-buffered estimate: bf16 input lane-padded Cin->128 + padded output.
        vmem = 2 * rows * (128 * 2 + cout_pad * out_itemsize)
        if vmem > (12 << 20):
            continue
        best = cand
    return best


def concat_conv2d_nhwc(t, x_nhwc, w_oihw, bias, *, ksize=3, tb=None, chunk=256,
                       out_dtype=jnp.bfloat16):
    """ConcatConv2d forward, NHWC-native (no layout transposes).

    x_nhwc: (B, H, W, Cin); w_oihw: (Cout, Cin+1, KH, KW), channel 0 = t-channel.
    Valid conv (stride=1, padding=0, dilation=1, groups=1 — the module defaults);
    the t-channel folding below is only valid in that regime.
    Returns (B, OH, OW, Cout) in `out_dtype`.
    """
    B, H, W, Cin = x_nhwc.shape
    Cout, Cin1, KH, KW = w_oihw.shape
    assert Cin1 == Cin + 1 and KH == ksize and KW == ksize
    assert H >= KH and W >= KW, "degenerate spatial dims (need OH, OW >= 1)"
    OH, OW = H - KH + 1, W - KW + 1
    HW = H * W

    LANE = 128
    cout_pad = ((Cout + LANE - 1) // LANE) * LANE

    # Hoisted constant: every valid output position sees all taps of the constant
    # t-channel, so its contribution is per-output-channel:  bias + t * sum_taps(w_t).
    w32 = w_oihw.astype(jnp.float32)
    const = bias.astype(jnp.float32) + jnp.asarray(t, jnp.float32) * jnp.sum(
        w32[:, 0, :, :], axis=(1, 2))
    const_p = jnp.pad(const.reshape(1, Cout), ((0, 0), (0, cout_pad - Cout)))

    # Real-channel weights, tap-major (KH*KW, Cin, Cout), Cout lane-padded, bf16.
    w_x = jnp.transpose(w32[:, 1:, :, :], (2, 3, 1, 0)).reshape(KH * KW, Cin, Cout)
    w_xp = jnp.pad(w_x, ((0, 0), (0, 0), (0, cout_pad - Cout))).astype(jnp.bfloat16)

    # Fold batch + spatial into one M axis (free reshape); bf16 for the MXU.
    x2 = x_nhwc.reshape(B * HW, Cin).astype(jnp.bfloat16)

    out_itemsize = jnp.dtype(out_dtype).itemsize
    if tb is None:
        tb = _pick_batch_tile(B, HW, cout_pad, out_itemsize)
    assert B % tb == 0
    if (tb * HW) % 8 != 0:
        tb = B                      # full-dim block is always layout-legal fallback
    grid_b = B // tb

    kernel = functools.partial(_concat_conv2d_kernel, ksize=ksize, width=W, chunk=chunk)

    out_flat = pl.pallas_call(
        kernel,
        out_shape=jax.ShapeDtypeStruct((B * HW, cout_pad), out_dtype),
        grid=(grid_b,),
        in_specs=[
            pl.BlockSpec((tb * HW, Cin), lambda i: (i, 0)),               # activations
            pl.BlockSpec((KH * KW, Cin, cout_pad), lambda i: (0, 0, 0)),  # weights
            pl.BlockSpec((1, cout_pad), lambda i: (0, 0)),                # folded const
        ],
        out_specs=pl.BlockSpec((tb * HW, cout_pad), lambda i: (i, 0)),
        compiler_params=pltpu.CompilerParams(dimension_semantics=("parallel",)),
    )(x2, w_xp, const_p)

    # (B*H*W, Cout_pad) -> (B, H, W, Cout_pad) is a free reshape; junk rows
    # (oh >= OH, ow >= OW, and the never-written tile tails) are sliced away here.
    return out_flat.reshape(B, H, W, cout_pad)[:, :OH, :OW, :Cout]


def concat_conv2d(t, x_nchw, w_oihw, bias, *, ksize=3, tb=None,
                  out_dtype=jnp.bfloat16):
    """NCHW wrapper matching the PyTorch module API: x (B,Cin,H,W) -> (B,Cout,OH,OW).

    If the surrounding model keeps activations NHWC end-to-end, call
    concat_conv2d_nhwc directly and drop these two boundary transposes.
    """
    x_nhwc = jnp.transpose(x_nchw, (0, 2, 3, 1))
    out_nhwc = concat_conv2d_nhwc(t, x_nhwc, w_oihw, bias, ksize=ksize, tb=tb,
                                  out_dtype=out_dtype)
    return jnp.transpose(out_nhwc, (0, 3, 1, 2))


if __name__ == "__main__":
    # Small, deterministic example consistent with the module's forward.
    B, Cin, H, W = 2, 4, 16, 16
    Cout, ksize = 8, 3

    key = jax.random.PRNGKey(0)
    k_x, k_w, k_b = jax.random.split(key, 3)

    x = jax.random.normal(k_x, (B, Cin, H, W), dtype=jnp.float32)
    t = jnp.float32(0.5)

    # Deterministic Conv2d-style init (uniform in [-1/sqrt(fan_in), 1/sqrt(fan_in)]).
    fan_in = (Cin + 1) * ksize * ksize
    bound = 1.0 / (fan_in ** 0.5)
    w = jax.random.uniform(k_w, (Cout, Cin + 1, ksize, ksize), jnp.float32,
                           -bound, bound)
    b = jax.random.uniform(k_b, (Cout,), jnp.float32, -bound, bound)

    out = concat_conv2d(t, x, w, b, ksize=ksize)
    out = jax.block_until_ready(out)

    # Reference (plain JAX, f32) check of the exact PyTorch semantics.
    tt = jnp.ones_like(x[:, :1, :, :]) * t
    ttx = jnp.concatenate([tt, x], axis=1)
    ref = jax.lax.conv_general_dilated(
        ttx, w, window_strides=(1, 1), padding="VALID",
        dimension_numbers=("NCHW", "OIHW", "NCHW")) + b[None, :, None, None]

    assert out.shape == (B, Cout, H - ksize + 1, W - ksize + 1)
    # Kernel uses bf16 MXU inputs + bf16 output (f32 accumulation), so compare at
    # bf16-level tolerance.
    err = float(jnp.max(jnp.abs(out.astype(jnp.float32) - ref)))
    assert err < 4e-2, err
    print("KERNEL_OK")
</pallas_src>

<mosaic_0001>
module attributes {stable_mosaic.version = 11 : i64} {
  func.func @_concat_conv2d_kernel(%arg0: i32, %arg1: memref<256x4xbf16, #tpu.memory_space<vmem>>, %arg2: memref<9x4x128xbf16, #tpu.memory_space<vmem>>, %arg3: memref<1x128xf32, #tpu.memory_space<vmem>>, %arg4: memref<256x128xbf16, #tpu.memory_space<vmem>>) attributes {dimension_semantics = [#tpu.dimension_semantics<parallel>], iteration_bounds = array<i64: 2>, scalar_prefetch = 0 : i64, scratch_operands = 0 : i64, tpu.core_type = #tpu.core_type<tc>, window_params = [{transform_indices = @transform_0, window_bounds = array<i64: 256, 4>}, {pipeline_mode = #tpu.pipeline_mode<synchronous>, transform_indices = @transform_1, window_bounds = array<i64: 9, 4, 128>}, {pipeline_mode = #tpu.pipeline_mode<synchronous>, transform_indices = @transform_2, window_bounds = array<i64: 1, 128>}, {transform_indices = @transform_3, window_bounds = array<i64: 256, 128>}]} {
    %c0 = arith.constant 0 : index
    %c0_0 = arith.constant 0 : index
    %0 = vector.load %arg3[%c0, %c0_0] : memref<1x128xf32, #tpu.memory_space<vmem>>, vector<1x128xf32>
    %c0_1 = arith.constant 0 : index
    %c0_2 = arith.constant 0 : index
    %c0_3 = arith.constant 0 : index
    %1 = vector.load %arg2[%c0_1, %c0_2, %c0_3] : memref<9x4x128xbf16, #tpu.memory_space<vmem>>, vector<1x4x128xbf16>
    %2 = vector.shape_cast %1 : vector<1x4x128xbf16> to vector<4x128xbf16>
    %c1 = arith.constant 1 : index
    %c0_4 = arith.constant 0 : index
    %c0_5 = arith.constant 0 : index
    %3 = vector.load %arg2[%c1, %c0_4, %c0_5] : memref<9x4x128xbf16, #tpu.memory_space<vmem>>, vector<1x4x128xbf16>
    %4 = vector.shape_cast %3 : vector<1x4x128xbf16> to vector<4x128xbf16>
    %c2 = arith.constant 2 : index
    %c0_6 = arith.constant 0 : index
    %c0_7 = arith.constant 0 : index
    %5 = vector.load %arg2[%c2, %c0_6, %c0_7] : memref<9x4x128xbf16, #tpu.memory_space<vmem>>, vector<1x4x128xbf16>
    %6 = vector.shape_cast %5 : vector<1x4x128xbf16> to vector<4x128xbf16>
    %c3 = arith.constant 3 : index
    %c0_8 = arith.constant 0 : index
    %c0_9 = arith.constant 0 : index
    %7 = vector.load %arg2[%c3, %c0_8, %c0_9] : memref<9x4x128xbf16, #tpu.memory_space<vmem>>, vector<1x4x128xbf16>
    %8 = vector.shape_cast %7 : vector<1x4x128xbf16> to vector<4x128xbf16>
    %c4 = arith.constant 4 : index
    %c0_10 = arith.constant 0 : index
    %c0_11 = arith.constant 0 : index
    %9 = vector.load %arg2[%c4, %c0_10, %c0_11] : memref<9x4x128xbf16, #tpu.memory_space<vmem>>, vector<1x4x128xbf16>
    %10 = vector.shape_cast %9 : vector<1x4x128xbf16> to vector<4x128xbf16>
    %c5 = arith.constant 5 : index
    %c0_12 = arith.constant 0 : index
    %c0_13 = arith.constant 0 : index
    %11 = vector.load %arg2[%c5, %c0_12, %c0_13] : memref<9x4x128xbf16, #tpu.memory_space<vmem>>, vector<1x4x128xbf16>
    %12 = vector.shape_cast %11 : vector<1x4x128xbf16> to vector<4x128xbf16>
    %c6 = arith.constant 6 : index
    %c0_14 = arith.constant 0 : index
    %c0_15 = arith.constant 0 : index
    %13 = vector.load %arg2[%c6, %c0_14, %c0_15] : memref<9x4x128xbf16, #tpu.memory_space<vmem>>, vector<1x4x128xbf16>
    %14 = vector.shape_cast %13 : vector<1x4x128xbf16> to vector<4x128xbf16>
    %c7 = arith.constant 7 : index
    %c0_16 = arith.constant 0 : index
    %c0_17 = arith.constant 0 : index
    %15 = vector.load %arg2[%c7, %c0_16, %c0_17] : memref<9x4x128xbf16, #tpu.memory_space<vmem>>, vector<1x4x128xbf16>
    %16 = vector.shape_cast %15 : vector<1x4x128xbf16> to vector<4x128xbf16>
    %c8 = arith.constant 8 : index
    %c0_18 = arith.constant 0 : index
    %c0_19 = arith.constant 0 : index
    %17 = vector.load %arg2[%c8, %c0_18, %c0_19] : memref<9x4x128xbf16, #tpu.memory_space<vmem>>, vector<1x4x128xbf16>
    %18 = vector.shape_cast %17 : vector<1x4x128xbf16> to vector<4x128xbf16>
    %19 = vector.shape_cast %0 : vector<1x128xf32> to vector<1x128xf32>
    %20 = vector.broadcast %19 : vector<1x128xf32> to vector<222x128xf32>
    %c0_20 = arith.constant 0 : index
    %c0_21 = arith.constant 0 : index
    %21 = vector.load %arg1[%c0_20, %c0_21] : memref<256x4xbf16, #tpu.memory_space<vmem>>, vector<222x4xbf16>
    %cst = arith.constant dense<0.000000e+00> : vector<222x128xf32>
    %22 = tpu.matmul %21, %2, %cst {dimension_numbers = #tpu.dot_dimension_numbers<[1], [0], [0], [1], [0, 0, 1, 1], [], []>} : vector<222x4xbf16>, vector<4x128xbf16>, vector<222x128xf32> -> vector<222x128xf32>
    %23 = arith.addf %20, %22 : vector<222x128xf32>
    %c1_22 = arith.constant 1 : index
    %c0_23 = arith.constant 0 : index
    %24 = vector.load %arg1[%c1_22, %c0_23] : memref<256x4xbf16, #tpu.memory_space<vmem>>, vector<222x4xbf16>
    %cst_24 = arith.constant dense<0.000000e+00> : vector<222x128xf32>
    %25 = tpu.matmul %24, %4, %cst_24 {dimension_numbers = #tpu.dot_dimension_numbers<[1], [0], [0], [1], [0, 0, 1, 1], [], []>} : vector<222x4xbf16>, vector<4x128xbf16>, vector<222x128xf32> -> vector<222x128xf32>
    %26 = arith.addf %23, %25 : vector<222x128xf32>
    %c2_25 = arith.constant 2 : index
    %c0_26 = arith.constant 0 : index
    %27 = vector.load %arg1[%c2_25, %c0_26] : memref<256x4xbf16, #tpu.memory_space<vmem>>, vector<222x4xbf16>
    %cst_27 = arith.constant dense<0.000000e+00> : vector<222x128xf32>
    %28 = tpu.matmul %27, %6, %cst_27 {dimension_numbers = #tpu.dot_dimension_numbers<[1], [0], [0], [1], [0, 0, 1, 1], [], []>} : vector<222x4xbf16>, vector<4x128xbf16>, vector<222x128xf32> -> vector<222x128xf32>
    %29 = arith.addf %26, %28 : vector<222x128xf32>
    %c16 = arith.constant 16 : index
    %c0_28 = arith.constant 0 : index
    %30 = vector.load %arg1[%c16, %c0_28] : memref<256x4xbf16, #tpu.memory_space<vmem>>, vector<222x4xbf16>
    %cst_29 = arith.constant dense<0.000000e+00> : vector<222x128xf32>
    %31 = tpu.matmul %30, %8, %cst_29 {dimension_numbers = #tpu.dot_dimension_numbers<[1], [0], [0], [1], [0, 0, 1, 1], [], []>} : vector<222x4xbf16>, vector<4x128xbf16>, vector<222x128xf32> -> vector<222x128xf32>
    %32 = arith.addf %29, %31 : vector<222x128xf32>
    %c17 = arith.constant 17 : index
    %c0_30 = arith.constant 0 : index
    %33 = vector.load %arg1[%c17, %c0_30] : memref<256x4xbf16, #tpu.memory_space<vmem>>, vector<222x4xbf16>
    %cst_31 = arith.constant dense<0.000000e+00> : vector<222x128xf32>
    %34 = tpu.matmul %33, %10, %cst_31 {dimension_numbers = #tpu.dot_dimension_numbers<[1], [0], [0], [1], [0, 0, 1, 1], [], []>} : vector<222x4xbf16>, vector<4x128xbf16>, vector<222x128xf32> -> vector<222x128xf32>
    %35 = arith.addf %32, %34 : vector<222x128xf32>
    %c18 = arith.constant 18 : index
    %c0_32 = arith.constant 0 : index
    %36 = vector.load %arg1[%c18, %c0_32] : memref<256x4xbf16, #tpu.memory_space<vmem>>, vector<222x4xbf16>
    %cst_33 = arith.constant dense<0.000000e+00> : vector<222x128xf32>
    %37 = tpu.matmul %36, %12, %cst_33 {dimension_numbers = #tpu.dot_dimension_numbers<[1], [0], [0], [1], [0, 0, 1, 1], [], []>} : vector<222x4xbf16>, vector<4x128xbf16>, vector<222x128xf32> -> vector<222x128xf32>
    %38 = arith.addf %35, %37 : vector<222x128xf32>
    %c32 = arith.constant 32 : index
    %c0_34 = arith.constant 0 : index
    %39 = vector.load %arg1[%c32, %c0_34] : memref<256x4xbf16, #tpu.memory_space<vmem>>, vector<222x4xbf16>
    %cst_35 = arith.constant dense<0.000000e+00> : vector<222x128xf32>
    %40 = tpu.matmul %39, %14, %cst_35 {dimension_numbers = #tpu.dot_dimension_numbers<[1], [0], [0], [1], [0, 0, 1, 1], [], []>} : vector<222x4xbf16>, vector<4x128xbf16>, vector<222x128xf32> -> vector<222x128xf32>
    %41 = arith.addf %38, %40 : vector<222x128xf32>
    %c33 = arith.constant 33 : index
    %c0_36 = arith.constant 0 : index
    %42 = vector.load %arg1[%c33, %c0_36] : memref<256x4xbf16, #tpu.memory_space<vmem>>, vector<222x4xbf16>
    %cst_37 = arith.constant dense<0.000000e+00> : vector<222x128xf32>
    %43 = tpu.matmul %42, %16, %cst_37 {dimension_numbers = #tpu.dot_dimension_numbers<[1], [0], [0], [1], [0, 0, 1, 1], [], []>} : vector<222x4xbf16>, vector<4x128xbf16>, vector<222x128xf32> -> vector<222x128xf32>
    %44 = arith.addf %41, %43 : vector<222x128xf32>
    %c34 = arith.constant 34 : index
    %c0_38 = arith.constant 0 : index
    %45 = vector.load %arg1[%c34, %c0_38] : memref<256x4xbf16, #tpu.memory_space<vmem>>, vector<222x4xbf16>
    %cst_39 = arith.constant dense<0.000000e+00> : vector<222x128xf32>
    %46 = tpu.matmul %45, %18, %cst_39 {dimension_numbers = #tpu.dot_dimension_numbers<[1], [0], [0], [1], [0, 0, 1, 1], [], []>} : vector<222x4xbf16>, vector<4x128xbf16>, vector<222x128xf32> -> vector<222x128xf32>
    %47 = arith.addf %44, %46 : vector<222x128xf32>
    %48 = arith.truncf %47 : vector<222x128xf32> to vector<222x128xbf16>
    %c0_40 = arith.constant 0 : index
    %c0_41 = arith.constant 0 : index
    %49 = vector.load %arg4[%c0_40, %c0_41] : memref<256x128xbf16, #tpu.memory_space<vmem>>, vector<222x128xbf16>
    tpu.vector_store %arg4[%c0_40, %c0_41], %48 {strides = array<i32>} : memref<256x128xbf16, #tpu.memory_space<vmem>>, vector<222x128xbf16>,
    return
  }
  func.func @transform_0(%arg0: i32) -> (i32, i32) {
    %c0_i32 = arith.constant 0 : i32
    %c0_i32_0 = arith.constant 0 : i32
    return %arg0, %c0_i32 : i32, i32
  }
  func.func @transform_1(%arg0: i32) -> (i32, i32, i32) {
    %c0_i32 = arith.constant 0 : i32
    %c0_i32_0 = arith.constant 0 : i32
    %c0_i32_1 = arith.constant 0 : i32
    %c0_i32_2 = arith.constant 0 : i32
    return %c0_i32, %c0_i32_0, %c0_i32_1 : i32, i32, i32
  }
  func.func @transform_2(%arg0: i32) -> (i32, i32) {
    %c0_i32 = arith.constant 0 : i32
    %c0_i32_0 = arith.constant 0 : i32
    %c0_i32_1 = arith.constant 0 : i32
    return %c0_i32, %c0_i32_0 : i32, i32
  }
  func.func @transform_3(%arg0: i32) -> (i32, i32) {
    %c0_i32 = arith.constant 0 : i32
    %c0_i32_0 = arith.constant 0 : i32
    return %arg0, %c0_i32 : i32, i32
  }
}

</mosaic_0001>

<llo_original>
// kernel: tpu_custom_call.1
$region0: #{tpu_custom_call.1}
  #allocation0 [shape = 'u32[]', space=smem, size = 0x4, offset = 0x4, fixed_abs, tag = 'smem constant byte address 0x4 - core index']
  #allocation1 [shape = 'u32[144,128]{1,0:T(1,128)}', space=vmem, size = 0x12000, scoped, tag = 'internal scratch']
  %s0 = inlined_call_operand.vmem [shape: bf16[512,4], index: 0, kind: input, shape index: {}]
  %s1 = inlined_call_operand.vmem [shape: bf16[9,4,128], index: 1, kind: input, shape index: {}]
  %s2 = inlined_call_operand.vmem [shape: f32[1,128], index: 2, kind: input, shape index: {}]
  %s3 = inlined_call_operand.hbm [shape: bf16[512,128], index: 3, kind: output, shape index: {}]
  %s4 = sld [smem:[#allocation0]]
  $region45: #{tpu_custom_call.1} parent=0
    _
  %s6 = ssub.s32 1, %s4
  %s7 = scalar_select 0, %s6, %s4
  $region1: #{tpu_custom_call.1} parent=0
    #allocation2 [shape = 'u8[131072]{0}', space=vmem, size = 0x20000, scoped, tag = 'output window, operand 0']
    #allocation3 [shape = 's32[2]{0}', space=sflag, size = 0x8, scoped, tag = 'scoped memory for tpu_custom_call.1']
    %8 = vsyncpa [#allocation3], 0
    %s9 = scalar_lea.sflag [#allocation3], 1
    %10 = vsyncpa %s9, 0
    loop: start=0, step=1, limit=4
    $region2: #{tpu_custom_call.1} parent=1 // loop_pre_header
      _
    $region3: #{tpu_custom_call.1} parent=1 // loop_header
      %s12 = sphi 0, %s16
      %p13 = scmp.ge.s32.totalorder %s12, 4
      %s22 = sphi 0, %s24
      %s25 = sphi 0, %s22
      %s26 = sphi 0, %s25
      %s42 = sphi 0, %s26
      %s46 = sphi 0, %s46
      %s48 = sphi 0, %s46
      %s49 = sphi 0, %s48
      %s63 = sphi 0, %s49
      %s67 = sphi 0, %s67
      %s69 = sphi 0, %s67
      %s70 = sphi 0, %s69
      %s84 = sphi 0, %s70
      %s90 = sphi 0, %s92
      %s93 = sphi 0, %s90
      %s94 = sphi 0, %s93
      %s110 = sphi 0, %s94
    $region4: #{tpu_custom_call.1} parent=1 // loop_header_branch
      %15 = sbr.rel (%p13) target = $region8
    $region5: #{tpu_custom_call.1} parent=1 // loop_body
      %s17 = ssub.s32 %s12, 1
      %s18 = ssub.s32 %s12, 2
      %s19 = sadd.s32 %s12, 1
      %s20 = ssub.s32 %s12, %s19
      %p21 = scmp.eq.s32.totalorder %s20, 0
      %s23 = sadd.s32 %s22, 1
      %s24 = scalar_select %p21, %s22, %s23
      %p27 = pneg %p21
      %p28 = scmp.eq.s32.totalorder %s12, 1
      %p29 = por %p27, %p28
      %p30 = scmp.ne.s32.totalorder %s22, %s25
      %p31 = scmp.eq.s32.totalorder %s12, 0
      %p32 = por %p30, %p31
      %p33 = scmp.ne.s32.totalorder %s22, %s25
      %p34 = scmp.eq.s32.totalorder %s17, 1
      %p35 = por %p33, %p34
      %p36 = scmp.ne.s32.totalorder %s25, %s26
      %p37 = scmp.eq.s32.totalorder %s17, 0
      %p38 = por %p36, %p37
      %p39 = scmp.ne.s32.totalorder %s25, %s26
      %p40 = scmp.eq.s32.totalorder %s18, 1
      %p41 = por %p39, %p40
      %p43 = scmp.ne.s32.totalorder %s26, %s42
      %p44 = scmp.eq.s32.totalorder %s18, 0
      %p45 = por %p43, %p44
      %s47 = sadd.s32 %s46, 1
      %p50 = scmp.eq.s32.totalorder %s12, 1
      %p51 = scmp.ne.s32.totalorder %s46, %s48
      %p52 = scmp.eq.s32.totalorder %s12, 0
      %p53 = por %p51, %p52
      %p54 = scmp.ne.s32.totalorder %s46, %s48
      %p55 = scmp.eq.s32.totalorder %s17, 1
      %p56 = por %p54, %p55
      %p57 = scmp.ne.s32.totalorder %s48, %s49
      %p58 = scmp.eq.s32.totalorder %s17, 0
      %p59 = por %p57, %p58
      %p60 = scmp.ne.s32.totalorder %s48, %s49
      %p61 = scmp.eq.s32.totalorder %s18, 1
      %p62 = por %p60, %p61
      %p64 = scmp.ne.s32.totalorder %s49, %s63
      %p65 = scmp.eq.s32.totalorder %s18, 0
      %p66 = por %p64, %p65
      %s68 = sadd.s32 %s67, 1
      %p71 = scmp.eq.s32.totalorder %s12, 1
      %p72 = scmp.ne.s32.totalorder %s67, %s69
      %p73 = scmp.eq.s32.totalorder %s12, 0
      %p74 = por %p72, %p73
      %p75 = scmp.ne.s32.totalorder %s67, %s69
      %p76 = scmp.eq.s32.totalorder %s17, 1
      %p77 = por %p75, %p76
      %p78 = scmp.ne.s32.totalorder %s69, %s70
      %p79 = scmp.eq.s32.totalorder %s17, 0
      %p80 = por %p78, %p79
      %p81 = scmp.ne.s32.totalorder %s69, %s70
      %p82 = scmp.eq.s32.totalorder %s18, 1
      %p83 = por %p81, %p82
      %p85 = scmp.ne.s32.totalorder %s70, %s84
      %p86 = scmp.eq.s32.totalorder %s18, 0
      %p87 = por %p85, %p86
      %s88 = ssub.s32 %s12, %s19
      %p89 = scmp.eq.s32.totalorder %s88, 0
      %s91 = sadd.s32 %s90, 1
      %s92 = scalar_select %p89, %s90, %s91
      %p95 = pneg %p89
      %p96 = scmp.eq.s32.totalorder %s12, 1
      %p97 = por %p95, %p96
      %p98 = scmp.ne.s32.totalorder %s90, %s93
      %p99 = scmp.eq.s32.totalorder %s12, 0
      %p100 = por %p98, %p99
      %p101 = scmp.ne.s32.totalorder %s90, %s93
      %p102 = scmp.eq.s32.totalorder %s17, 1
      %p103 = por %p101, %p102
      %p104 = scmp.ne.s32.totalorder %s93, %s94
      %p105 = scmp.eq.s32.totalorder %s17, 0
      %p106 = por %p104, %p105
      %p107 = scmp.ne.s32.totalorder %s93, %s94
      %p108 = scmp.eq.s32.totalorder %s18, 1
      %p109 = por %p107, %p108
      %p111 = scmp.ne.s32.totalorder %s94, %s110
      %p112 = scmp.eq.s32.totalorder %s18, 0
      %p113 = por %p111, %p112
      %p114 = scmp.le.s32.totalorder 1, %s12
      %p115 = scmp.lt.s32.totalorder %s12, 3
      %p116 = pnand %p114, %p115
      %p117 = pneg %p116
      // Predicated region
      $region9: #{tpu_custom_call.1} parent=5 // pred_check
        _
      $region10: #{tpu_custom_call.1} parent=5 // pred_check_branch
        %119 = sbr.rel (%p116) target = $region12
      $region11: #{tpu_custom_call.1} parent=5 // pred_region
        %s120 = ssub.s32 %s12, 1
        // Predicated region
        $region13: #{tpu_custom_call.1} parent=11 // pred_check
          %p121 = pneg %p59
        $region14: #{tpu_custom_call.1} parent=11 // pred_check_branch
          %123 = sbr.rel (%p121) target = $region16
        $region15: #{tpu_custom_call.1} parent=11 // pred_region
          _
        $region16: #{tpu_custom_call.1} parent=11 // pred_fallthru
          _
        // Predicated region
        $region17: #{tpu_custom_call.1} parent=11 // pred_check
          %p124 = pneg %p80
        $region18: #{tpu_custom_call.1} parent=11 // pred_check_branch
          %126 = sbr.rel (%p124) target = $region20
        $region19: #{tpu_custom_call.1} parent=11 // pred_region
          _
        $region20: #{tpu_custom_call.1} parent=11 // pred_fallthru
          _
      $region12: #{tpu_custom_call.1} parent=5 // pred_fallthru
        _
      %p127 = scmp.lt.s32.totalorder %s12, 2
      // Predicated region
      $region21: #{tpu_custom_call.1} parent=5 // pred_check
        %p128 = pneg %p127
      $region22: #{tpu_custom_call.1} parent=5 // pred_check_branch
        %130 = sbr.rel (%p128) target = $region24
      $region23: #{tpu_custom_call.1} parent=5 // pred_region
        // Predicated region
        $region25: #{tpu_custom_call.1} parent=23 // pred_check
          %p131 = pneg %p32
        $region26: #{tpu_custom_call.1} parent=23 // pred_check_branch
          %133 = sbr.rel (%p131) target = $region28
        $region27: #{tpu_custom_call.1} parent=23 // pred_region
          %s134 = smul.u32 32, %s12
          %p135 = scmp.lt.s32.totalorder %s134, 63
          %s136 = scalar_select %p135, %s134, 63
          %s137 = smul.addr %s136, 4
          %s138 = scalar_lea.vmem %s0, %s137
          %s139 = smul.u32 32, %s12
        $region28: #{tpu_custom_call.1} parent=23 // pred_fallthru
          _
      $region24: #{tpu_custom_call.1} parent=5 // pred_fallthru
        _
      %p140 = scmp.le.s32.totalorder 1, %s12
      %p141 = scmp.lt.s32.totalorder %s12, 3
      %p142 = pnand %p140, %p141
      %p143 = pneg %p142
      // Predicated region
      $region29: #{tpu_custom_call.1} parent=5 // pred_check
        _
      $region30: #{tpu_custom_call.1} parent=5 // pred_check_branch
        %145 = sbr.rel (%p142) target = $region32
      $region31: #{tpu_custom_call.1} parent=5 // pred_region
        %s146 = ssub.s32 %s12, 1
        %s147 = smul.u32 32, %s17
        %p148 = scmp.lt.s32.totalorder %s147, 63
        %s149 = scalar_select %p148, %s147, 63
        %s150 = smul.addr %s149, 4
        %s151 = scalar_lea.vmem %s0, %s150
        %p152 = pneg %p38
        %p153 = pneg %p35
        %p154 = pneg %p59
        %p155 = pneg %p56
        %p156 = pneg %p80
        %p157 = pneg %p77
        %p158 = pneg %p106
        %p159 = pneg %p103
        %s160 = sand.u32 %s93, 1
        %s161 = scalar_lea.sflag [#allocation3], %s160
        %s162 = sand.u32 %s93, 1
        %s163 = smul.addr %s162, 128
        %s164 = scalar_lea.vmem [#allocation2], %s163
        %s165 = smul.u32 32, %s17
        %p166 = scmp.lt.s32.totalorder %s165, 63
        %s167 = scalar_select %p166, %s165, 63
        %s168 = smul.addr %s167, 4
        %s169 = scalar_lea.vmem %s0, %s168
        %s170 = smul.u32 32, %s17
        %s171 = smul.u32 32, %s17
        %v173 = vld [vmem:[%s2] sm:$0x1]
        %v174 = vld [vmem:[%s1] sm:$0x3]
        %s175 = scalar_lea.vmem %s1, 2
        %v176 = vld [vmem:[%s175] sm:$0x3]
        %s177 = scalar_lea.vmem %s1, 4
        %v178 = vld [vmem:[%s177] sm:$0x3]
        %s179 = scalar_lea.vmem %s1, 6
        %v180 = vld [vmem:[%s179] sm:$0x3]
        %s181 = scalar_lea.vmem %s1, 8
        %v182 = vld [vmem:[%s181] sm:$0x3]
        %s183 = scalar_lea.vmem %s1, 10
        %v184 = vld [vmem:[%s183] sm:$0x3]
        %s185 = scalar_lea.vmem %s1, 12
        %v186 = vld [vmem:[%s185] sm:$0x3]
        %s187 = scalar_lea.vmem %s1, 14
        %v188 = vld [vmem:[%s187] sm:$0x3]
        %s189 = scalar_lea.vmem %s1, 16
        %v190 = vld [vmem:[%s189] sm:$0x3]
        %v192 = vlaneseq
        %v193 = vshrl.u32 %v192, 7
        %v194 = vsub.s32 0, %v193
        %v195 = vrot.slane %v173, %v194
        %v197 = vld [vmem:[%s169] sm:$0xf]
        %v198 = vld [vmem:[%s169 + $0x4] sm:$0xf]
        %v199 = vld [vmem:[%s169 + $0x8] sm:$0xf]
        %v200 = vld [vmem:[%s169 + $0xc] sm:$0xf]
        %v201 = vld [vmem:[%s169 + $0x10] sm:$0xf]
        %v202 = vld [vmem:[%s169 + $0x14] sm:$0xf]
        %v203 = vld [vmem:[%s169 + $0x18] sm:$0xf]
        %v204 = vld [vmem:[%s169 + $0x1c] sm:$0xf]
        %v205 = vld [vmem:[%s169 + $0x20] sm:$0xf]
        %v206 = vld [vmem:[%s169 + $0x24] sm:$0xf]
        %v207 = vld [vmem:[%s169 + $0x28] sm:$0xf]
        %v208 = vld [vmem:[%s169 + $0x2c] sm:$0xf]
        %v209 = vld [vmem:[%s169 + $0x30] sm:$0xf]
        %v210 = vld [vmem:[%s169 + $0x34] sm:$0xf]
        %v211 = vld [vmem:[%s169 + $0x38] sm:$0xf]
        %v212 = vld [vmem:[%s169 + $0x3c] sm:$0xf]
        %v213 = vld [vmem:[%s169 + $0x40] sm:$0xf]
        %v214 = vld [vmem:[%s169 + $0x44] sm:$0xf]
        %v215 = vld [vmem:[%s169 + $0x48] sm:$0xf]
        %v216 = vld [vmem:[%s169 + $0x4c] sm:$0xf]
        %v217 = vld [vmem:[%s169 + $0x50] sm:$0xf]
        %v218 = vld [vmem:[%s169 + $0x54] sm:$0xf]
        %v219 = vld [vmem:[%s169 + $0x58] sm:$0xf]
        %v220 = vld [vmem:[%s169 + $0x5c] sm:$0xf]
        %v221 = vld [vmem:[%s169 + $0x60] sm:$0xf]
        %v222 = vld [vmem:[%s169 + $0x64] sm:$0xf]
        %v223 = vld [vmem:[%s169 + $0x68] sm:$0xf]
        %v224 = vld [vmem:[%s169 + $0x6c] sm:$0x7]
        %v253 = vunpack.c.l.b16 %v197
        %v254 = vunpack.c.l.b16 %v198
        %v255 = vunpack.c.l.b16 %v199
        %v256 = vunpack.c.l.b16 %v200
        %v257 = vunpack.c.l.b16 %v201
        %v258 = vunpack.c.l.b16 %v202
        %v259 = vunpack.c.l.b16 %v203
        %v260 = vunpack.c.l.b16 %v204
        %v261 = vunpack.c.l.b16 %v205
        %v262 = vunpack.c.l.b16 %v206
        %v263 = vunpack.c.l.b16 %v207
        %v264 = vunpack.c.l.b16 %v208
        %v265 = vunpack.c.l.b16 %v209
        %v266 = vunpack.c.l.b16 %v210
        %v267 = vunpack.c.l.b16 %v211
        %v268 = vunpack.c.l.b16 %v212
        %v269 = vunpack.c.l.b16 %v213
        %v270 = vunpack.c.l.b16 %v214
        %v271 = vunpack.c.l.b16 %v215
        %v272 = vunpack.c.l.b16 %v216
        %v273 = vunpack.c.l.b16 %v217
        %v274 = vunpack.c.l.b16 %v218
        %v275 = vunpack.c.l.b16 %v219
        %v276 = vunpack.c.l.b16 %v220
        %v277 = vunpack.c.l.b16 %v221
        %v278 = vunpack.c.l.b16 %v222
        %v279 = vunpack.c.l.b16 %v223
        %v280 = vunpack.c.l.b16 %v224
        %v281 = vpack.c.b16 %v254, %v253
        %v282 = vpack.c.b16 %v256, %v255
        %v283 = vpack.c.b16 %v258, %v257
        %v284 = vpack.c.b16 %v260, %v259
        %v285 = vpack.c.b16 %v262, %v261
        %v286 = vpack.c.b16 %v264, %v263
        %v287 = vpack.c.b16 %v266, %v265
        %v288 = vpack.c.b16 %v268, %v267
        %v289 = vpack.c.b16 %v270, %v269
        %v290 = vpack.c.b16 %v272, %v271
        %v291 = vpack.c.b16 %v274, %v273
        %v292 = vpack.c.b16 %v276, %v275
        %v293 = vpack.c.b16 %v278, %v277
        %v294 = vpack.c.b16 %v280, %v279
        %vm295 = vcmask 31744
        %v297 = vsel %vm295, %v281, 0
        %v300 = vsel %vm295, %v282, 0
        %v303 = vsel %vm295, %v283, 0
        %v306 = vsel %vm295, %v284, 0
        %v309 = vsel %vm295, %v285, 0
        %v312 = vsel %vm295, %v286, 0
        %v315 = vsel %vm295, %v287, 0
        %v318 = vsel %vm295, %v288, 0
        %v321 = vsel %vm295, %v289, 0
        %v324 = vsel %vm295, %v290, 0
        %v327 = vsel %vm295, %v291, 0
        %v330 = vsel %vm295, %v292, 0
        %v333 = vsel %vm295, %v293, 0
        %v336 = vsel %vm295, %v294, 0
        %vm338 = vcmask 1041408
        %v340 = vsel %vm338, %v174, 0
        %342 = vmatprep.subr.bf16.mxu0 0
        %343 = vmatpush1.bf16.msra.mxu0 %v340
        %344 = vmatprep.subr.bf16.mxu0 0
        %345 = vmatpush1.bf16.msra.mxu0 0
        %346 = vmatprep.subr.bf16.mxu0 0
        %347 = vmatpush1.bf16.msra.mxu0 0
        %348 = vmatprep.subr.bf16.mxu0 0
        %349 = vmatpush1.bf16.msra.mxu0 0
        %350 = vmatprep.subr.bf16.mxu0 0
        %351 = vmatpush1.bf16.msra.mxu0 0
        %352 = vmatprep.subr.bf16.mxu0 0
        %353 = vmatpush1.bf16.msra.mxu0 0
        %354 = vmatprep.subr.bf16.mxu0 0
        %355 = vmatpush1.bf16.msra.mxu0 0
        %356 = vmatprep.subr.bf16.mxu0 0
        %357 = vmatpush1.bf16.msra.mxu0 0
        %358 = vmatprep.subr.bf16.mxu0 0
        %359 = vmatpush1.bf16.msra.mxu0 0
        %360 = vmatprep.subr.bf16.mxu0 0
        %361 = vmatpush1.bf16.msra.mxu0 0
        %362 = vmatprep.subr.bf16.mxu0 0
        %363 = vmatpush1.bf16.msra.mxu0 0
        %364 = vmatprep.subr.bf16.mxu0 0
        %365 = vmatpush1.bf16.msra.mxu0 0
        %366 = vmatprep.subr.bf16.mxu0 0
        %367 = vmatpush1.bf16.msra.mxu0 0
        %368 = vmatprep.subr.bf16.mxu0 0
        %369 = vmatpush1.bf16.msra.mxu0 0
        %370 = vmatprep.subr.bf16.mxu0 0
        %371 = vmatpush1.bf16.msra.mxu0 0
        %372 = vmatprep.subr.bf16.mxu0 0
        %373 = vmatpush1.bf16.msra.mxu0 0
        %374 = vmatprep.mubr.bf16.mxu0 0
        %375 = vmatmul.mubr.bf16.gmra.mrb[0].mxu0 %v297
        %v376 = vpop.f32.mrb[0].mxu0
        %v377 = vadd.f32 0.0, %v376
        %v378 = vpop.f32.mrb[0].mxu0
        %v379 = vpop.f32.mrb[0].mxu0
        %v380 = vadd.f32 0.0, %v379
        %v381 = vpop.f32.mrb[0].mxu0
        %382 = vmatprep.mubr.bf16.mxu0 0
        %383 = vmatmul.mubr.bf16.gmra.mrb[0].mxu0 %v300
        %v384 = vpop.f32.mrb[0].mxu0
        %v385 = vadd.f32 0.0, %v384
        %v386 = vpop.f32.mrb[0].mxu0
        %v387 = vpop.f32.mrb[0].mxu0
        %v388 = vadd.f32 0.0, %v387
        %v389 = vpop.f32.mrb[0].mxu0
        %390 = vmatprep.mubr.bf16.mxu0 0
        %391 = vmatmul.mubr.bf16.gmra.mrb[0].mxu0 %v303
        %v392 = vpop.f32.mrb[0].mxu0
        %v393 = vadd.f32 0.0, %v392
        %v394 = vpop.f32.mrb[0].mxu0
        %v395 = vpop.f32.mrb[0].mxu0
        %v396 = vadd.f32 0.0, %v395
        %v397 = vpop.f32.mrb[0].mxu0
        %398 = vmatprep.mubr.bf16.mxu0 0
        %399 = vmatmul.mubr.bf16.gmra.mrb[0].mxu0 %v306
        %v400 = vpop.f32.mrb[0].mxu0
        %v401 = vadd.f32 0.0, %v400
        %v402 = vpop.f32.mrb[0].mxu0
        %v403 = vpop.f32.mrb[0].mxu0
        %v404 = vadd.f32 0.0, %v403
        %v405 = vpop.f32.mrb[0].mxu0
        %406 = vmatprep.mubr.bf16.mxu0 0
        %407 = vmatmul.mubr.bf16.gmra.mrb[0].mxu0 %v309
        %v408 = vpop.f32.mrb[0].mxu0
        %v409 = vadd.f32 0.0, %v408
        %v410 = vpop.f32.mrb[0].mxu0
        %v411 = vpop.f32.mrb[0].mxu0
        %v412 = vadd.f32 0.0, %v411
        %v413 = vpop.f32.mrb[0].mxu0
        %414 = vmatprep.mubr.bf16.mxu0 0
        %415 = vmatmul.mubr.bf16.gmra.mrb[0].mxu0 %v312
        %v416 = vpop.f32.mrb[0].mxu0
        %v417 = vadd.f32 0.0, %v416
        %v418 = vpop.f32.mrb[0].mxu0
        %v419 = vpop.f32.mrb[0].mxu0
        %v420 = vadd.f32 0.0, %v419
        %v421 = vpop.f32.mrb[0].mxu0
        %422 = vmatprep.mubr.bf16.mxu0 0
        %423 = vmatmul.mubr.bf16.gmra.mrb[0].mxu0 %v315
        %v424 = vpop.f32.mrb[0].mxu0
        %v425 = vadd.f32 0.0, %v424
        %v426 = vpop.f32.mrb[0].mxu0
        %v427 = vpop.f32.mrb[0].mxu0
        %v428 = vadd.f32 0.0, %v427
        %v429 = vpop.f32.mrb[0].mxu0
        %430 = vmatprep.mubr.bf16.mxu0 0
        %431 = vmatmul.mubr.bf16.gmra.mrb[0].mxu0 %v318
        %v432 = vpop.f32.mrb[0].mxu0
        %v433 = vadd.f32 0.0, %v432
        %v434 = vpop.f32.mrb[0].mxu0
        %v435 = vpop.f32.mrb[0].mxu0
        %v436 = vadd.f32 0.0, %v435
        %v437 = vpop.f32.mrb[0].mxu0
        %438 = vmatprep.mubr.bf16.mxu0 0
        %439 = vmatmul.mubr.bf16.gmra.mrb[0].mxu0 %v321
        %v440 = vpop.f32.mrb[0].mxu0
        %v441 = vadd.f32 0.0, %v440
        %v442 = vpop.f32.mrb[0].mxu0
        %v443 = vpop.f32.mrb[0].mxu0
        %v444 = vadd.f32 0.0, %v443
        %v445 = vpop.f32.mrb[0].mxu0
        %446 = vmatprep.mubr.bf16.mxu0 0
        %447 = vmatmul.mubr.bf16.gmra.mrb[0].mxu0 %v324
        %v448 = vpop.f32.mrb[0].mxu0
        %v449 = vadd.f32 0.0, %v448
        %v450 = vpop.f32.mrb[0].mxu0
        %v451 = vpop.f32.mrb[0].mxu0
        %v452 = vadd.f32 0.0, %v451
        %v453 = vpop.f32.mrb[0].mxu0
        %454 = vmatprep.mubr.bf16.mxu0 0
        %455 = vmatmul.mubr.bf16.gmra.mrb[0].mxu0 %v327
        %v456 = vpop.f32.mrb[0].mxu0
        %v457 = vadd.f32 0.0, %v456
        %v458 = vpop.f32.mrb[0].mxu0
        %v459 = vpop.f32.mrb[0].mxu0
        %v460 = vadd.f32 0.0, %v459
        %v461 = vpop.f32.mrb[0].mxu0
        %462 = vmatprep.mubr.bf16.mxu0 0
        %463 = vmatmul.mubr.bf16.gmra.mrb[0].mxu0 %v330
        %v464 = vpop.f32.mrb[0].mxu0
        %v465 = vadd.f32 0.0, %v464
        %v466 = vpop.f32.mrb[0].mxu0
        %v467 = vpop.f32.mrb[0].mxu0
        %v468 = vadd.f32 0.0, %v467
        %v469 = vpop.f32.mrb[0].mxu0
        %470 = vmatprep.mubr.bf16.mxu0 0
        %471 = vmatmul.mubr.bf16.gmra.mrb[0].mxu0 %v333
        %v472 = vpop.f32.mrb[0].mxu0
        %v473 = vadd.f32 0.0, %v472
        %v474 = vpop.f32.mrb[0].mxu0
        %v475 = vpop.f32.mrb[0].mxu0
        %v476 = vadd.f32 0.0, %v475
        %v477 = vpop.f32.mrb[0].mxu0
        %478 = vmatprep.mubr.bf16.mxu0 0
        %479 = vmatmul.mubr.bf16.gmra.mrb[0].mxu0 %v336
        %v480 = vpop.f32.mrb[0].mxu0
        %v481 = vadd.f32 0.0, %v480
        %v482 = vpop.f32.mrb[0].mxu0
        %v483 = vpop.f32.mrb[0].mxu0
        %v484 = vadd.f32 0.0, %v483
        %v485 = vpop.f32.mrb[0].mxu0
        %486 = vdwg.mxu0
        %v487 = vadd.f32 %v195, %v377
        %v488 = vadd.f32 %v195, %v380
        %v489 = vadd.f32 %v195, %v385
        %v490 = vadd.f32 %v195, %v388
        %v491 = vadd.f32 %v195, %v393
        %v492 = vadd.f32 %v195, %v396
        %v493 = vadd.f32 %v195, %v401
        %v494 = vadd.f32 %v195, %v404
        %v495 = vadd.f32 %v195, %v409
        %v496 = vadd.f32 %v195, %v412
        %v497 = vadd.f32 %v195, %v417
        %v498 = vadd.f32 %v195, %v420
        %v499 = vadd.f32 %v195, %v425
        %v500 = vadd.f32 %v195, %v428
        %v501 = vadd.f32 %v195, %v433
        %v502 = vadd.f32 %v195, %v436
        %v503 = vadd.f32 %v195, %v441
        %v504 = vadd.f32 %v195, %v444
        %v505 = vadd.f32 %v195, %v449
        %v506 = vadd.f32 %v195, %v452
        %v507 = vadd.f32 %v195, %v457
        %v508 = vadd.f32 %v195, %v460
        %v509 = vadd.f32 %v195, %v465
        %v510 = vadd.f32 %v195, %v468
        %v511 = vadd.f32 %v195, %v473
        %v512 = vadd.f32 %v195, %v476
        %v513 = vadd.f32 %v195, %v481
        %v514 = vadd.f32 %v195, %v484
        %v515 = vld [vmem:[%s169 + $0x6c] sm:$0xf]
        %v517 = vunpack.c.l.b16 %v515
        %v518 = vpack.c.b16 %v517, %v279
        %vm519 = vsmask.f32 7424
        %v520 = vshrl.u32 %v281, 16
        %v522 = vshll.u32 %v281, 16
        %v524 = vrot.slane %v522, 1
        %v525 = vor.u32 %v520, %v524
        %v526 = vshll.u32 %v282, 16
        %v528 = vrot.slane %v526, 1
        %v529 = vsel %vm519, %v525, %v528
        %v530 = vshrl.u32 %v282, 16
        %v532 = vor.u32 %v530, %v528
        %v533 = vshll.u32 %v283, 16
        %v535 = vrot.slane %v533, 1
        %v536 = vsel %vm519, %v532, %v535
        %v537 = vshrl.u32 %v283, 16
        %v539 = vor.u32 %v537, %v535
        %v540 = vshll.u32 %v284, 16
        %v542 = vrot.slane %v540, 1
        %v543 = vsel %vm519, %v539, %v542
        %v544 = vshrl.u32 %v284, 16
        %v546 = vor.u32 %v544, %v542
        %v547 = vshll.u32 %v285, 16
        %v549 = vrot.slane %v547, 1
        %v550 = vsel %vm519, %v546, %v549
        %v551 = vshrl.u32 %v285, 16
        %v553 = vor.u32 %v551, %v549
        %v554 = vshll.u32 %v286, 16
        %v556 = vrot.slane %v554, 1
        %v557 = vsel %vm519, %v553, %v556
        %v558 = vshrl.u32 %v286, 16
        %v560 = vor.u32 %v558, %v556
        %v561 = vshll.u32 %v287, 16
        %v563 = vrot.slane %v561, 1
        %v564 = vsel %vm519, %v560, %v563
        %v565 = vshrl.u32 %v287, 16
        %v567 = vor.u32 %v565, %v563
        %v568 = vshll.u32 %v288, 16
        %v570 = vrot.slane %v568, 1
        %v571 = vsel %vm519, %v567, %v570
        %v572 = vshrl.u32 %v288, 16
        %v574 = vor.u32 %v572, %v570
        %v575 = vshll.u32 %v289, 16
        %v577 = vrot.slane %v575, 1
        %v578 = vsel %vm519, %v574, %v577
        %v579 = vshrl.u32 %v289, 16
        %v581 = vor.u32 %v579, %v577
        %v582 = vshll.u32 %v290, 16
        %v584 = vrot.slane %v582, 1
        %v585 = vsel %vm519, %v581, %v584
        %v586 = vshrl.u32 %v290, 16
        %v588 = vor.u32 %v586, %v584
        %v589 = vshll.u32 %v291, 16
        %v591 = vrot.slane %v589, 1
        %v592 = vsel %vm519, %v588, %v591
        %v593 = vshrl.u32 %v291, 16
        %v595 = vor.u32 %v593, %v591
        %v596 = vshll.u32 %v292, 16
        %v598 = vrot.slane %v596, 1
        %v599 = vsel %vm519, %v595, %v598
        %v600 = vshrl.u32 %v292, 16
        %v602 = vor.u32 %v600, %v598
        %v603 = vshll.u32 %v293, 16
        %v605 = vrot.slane %v603, 1
        %v606 = vsel %vm519, %v602, %v605
        %v607 = vshrl.u32 %v293, 16
        %v609 = vor.u32 %v607, %v605
        %v611 = vshll.u32 %v518, 16
        %v613 = vrot.slane %v611, 1
        %v614 = vsel %vm519, %v609, %v613
        %v615 = vshrl.u32 %v518, 16
        %v617 = vor.u32 %v615, %v613
        %v619 = vsel %vm295, %v529, 0
        %v622 = vsel %vm295, %v536, 0
        %v625 = vsel %vm295, %v543, 0
        %v628 = vsel %vm295, %v550, 0
        %v631 = vsel %vm295, %v557, 0
        %v634 = vsel %vm295, %v564, 0
        %v637 = vsel %vm295, %v571, 0
        %v640 = vsel %vm295, %v578, 0
        %v643 = vsel %vm295, %v585, 0
        %v646 = vsel %vm295, %v592, 0
        %v649 = vsel %vm295, %v599, 0
        %v652 = vsel %vm295, %v606, 0
        %v655 = vsel %vm295, %v614, 0
        %v658 = vsel %vm295, %v617, 0
        %v661 = vsel %vm338, %v176, 0
        %663 = vmatprep.subr.bf16.mxu0 0
        %664 = vmatpush1.bf16.msra.mxu0 %v661
        %665 = vmatprep.subr.bf16.mxu0 0
        %666 = vmatpush1.bf16.msra.mxu0 0
        %667 = vmatprep.subr.bf16.mxu0 0
        %668 = vmatpush1.bf16.msra.mxu0 0
        %669 = vmatprep.subr.bf16.mxu0 0
        %670 = vmatpush1.bf16.msra.mxu0 0
        %671 = vmatprep.subr.bf16.mxu0 0
        %672 = vmatpush1.bf16.msra.mxu0 0
        %673 = vmatprep.subr.bf16.mxu0 0
        %674 = vmatpush1.bf16.msra.mxu0 0
        %675 = vmatprep.subr.bf16.mxu0 0
        %676 = vmatpush1.bf16.msra.mxu0 0
        %677 = vmatprep.subr.bf16.mxu0 0
        %678 = vmatpush1.bf16.msra.mxu0 0
        %679 = vmatprep.subr.bf16.mxu0 0
        %680 = vmatpush1.bf16.msra.mxu0 0
        %681 = vmatprep.subr.bf16.mxu0 0
        %682 = vmatpush1.bf16.msra.mxu0 0
        %683 = vmatprep.subr.bf16.mxu0 0
        %684 = vmatpush1.bf16.msra.mxu0 0
        %685 = vmatprep.subr.bf16.mxu0 0
        %686 = vmatpush1.bf16.msra.mxu0 0
        %687 = vmatprep.subr.bf16.mxu0 0
        %688 = vmatpush1.bf16.msra.mxu0 0
        %689 = vmatprep.subr.bf16.mxu0 0
        %690 = vmatpush1.bf16.msra.mxu0 0
        %691 = vmatprep.subr.bf16.mxu0 0
        %692 = vmatpush1.bf16.msra.mxu0 0
        %693 = vmatprep.subr.bf16.mxu0 0
        %694 = vmatpush1.bf16.msra.mxu0 0
        %695 = vmatprep.mubr.bf16.mxu0 0
        %696 = vmatmul.mubr.bf16.gmra.mrb[0].mxu0 %v619
        %v697 = vpop.f32.mrb[0].mxu0
        %v698 = vadd.f32 0.0, %v697
        %v699 = vpop.f32.mrb[0].mxu0
        %v700 = vpop.f32.mrb[0].mxu0
        %v701 = vadd.f32 0.0, %v700
        %v702 = vpop.f32.mrb[0].mxu0
        %703 = vmatprep.mubr.bf16.mxu0 0
        %704 = vmatmul.mubr.bf16.gmra.mrb[0].mxu0 %v622
        %v705 = vpop.f32.mrb[0].mxu0
        %v706 = vadd.f32 0.0, %v705
        %v707 = vpop.f32.mrb[0].mxu0
        %v708 = vpop.f32.mrb[0].mxu0
        %v709 = vadd.f32 0.0, %v708
        %v710 = vpop.f32.mrb[0].mxu0
        %711 = vmatprep.mubr.bf16.mxu0 0
        %712 = vmatmul.mubr.bf16.gmra.mrb[0].mxu0 %v625
        %v713 = vpop.f32.mrb[0].mxu0
        %v714 = vadd.f32 0.0, %v713
        %v715 = vpop.f32.mrb[0].mxu0
        %v716 = vpop.f32.mrb[0].mxu0
        %v717 = vadd.f32 0.0, %v716
        %v718 = vpop.f32.mrb[0].mxu0
        %719 = vmatprep.mubr.bf16.mxu0 0
        %720 = vmatmul.mubr.bf16.gmra.mrb[0].mxu0 %v628
        %v721 = vpop.f32.mrb[0].mxu0
        %v722 = vadd.f32 0.0, %v721
        %v723 = vpop.f32.mrb[0].mxu0
        %v724 = vpop.f32.mrb[0].mxu0
        %v725 = vadd.f32 0.0, %v724
        %v726 = vpop.f32.mrb[0].mxu0
        %727 = vmatprep.mubr.bf16.mxu0 0
        %728 = vmatmul.mubr.bf16.gmra.mrb[0].mxu0 %v631
        %v729 = vpop.f32.mrb[0].mxu0
        %v730 = vadd.f32 0.0, %v729
        %v731 = vpop.f32.mrb[0].mxu0
        %v732 = vpop.f32.mrb[0].mxu0
        %v733 = vadd.f32 0.0, %v732
        %v734 = vpop.f32.mrb[0].mxu0
        %735 = vmatprep.mubr.bf16.mxu0 0
        %736 = vmatmul.mubr.bf16.gmra.mrb[0].mxu0 %v634
        %v737 = vpop.f32.mrb[0].mxu0
        %v738 = vadd.f32 0.0, %v737
        %v739 = vpop.f32.mrb[0].mxu0
        %v740 = vpop.f32.mrb[0].mxu0
        %v741 = vadd.f32 0.0, %v740
        %v742 = vpop.f32.mrb[0].mxu0
        %743 = vmatprep.mubr.bf16.mxu0 0
        %744 = vmatmul.mubr.bf16.gmra.mrb[0].mxu0 %v637
        %v745 = vpop.f32.mrb[0].mxu0
        %v746 = vadd.f32 0.0, %v745
        %v747 = vpop.f32.mrb[0].mxu0
        %v748 = vpop.f32.mrb[0].mxu0
        %v749 = vadd.f32 0.0, %v748
        %v750 = vpop.f32.mrb[0].mxu0
        %751 = vmatprep.mubr.bf16.mxu0 0
        %752 = vmatmul.mubr.bf16.gmra.mrb[0].mxu0 %v640
        %v753 = vpop.f32.mrb[0].mxu0
        %v754 = vadd.f32 0.0, %v753
        %v755 = vpop.f32.mrb[0].mxu0
        %v756 = vpop.f32.mrb[0].mxu0
        %v757 = vadd.f32 0.0, %v756
        %v758 = vpop.f32.mrb[0].mxu0
        %759 = vmatprep.mubr.bf16.mxu0 0
        %760 = vmatmul.mubr.bf16.gmra.mrb[0].mxu0 %v643
        %v761 = vpop.f32.mrb[0].mxu0
        %v762 = vadd.f32 0.0, %v761
        %v763 = vpop.f32.mrb[0].mxu0
        %v764 = vpop.f32.mrb[0].mxu0
        %v765 = vadd.f32 0.0, %v764
        %v766 = vpop.f32.mrb[0].mxu0
        %767 = vmatprep.mubr.bf16.mxu0 0
        %768 = vmatmul.mubr.bf16.gmra.mrb[0].mxu0 %v646
        %v769 = vpop.f32.mrb[0].mxu0
        %v770 = vadd.f32 0.0, %v769
        %v771 = vpop.f32.mrb[0].mxu0
        %v772 = vpop.f32.mrb[0].mxu0
        %v773 = vadd.f32 0.0, %v772
        %v774 = vpop.f32.mrb[0].mxu0
        %775 = vmatprep.mubr.bf16.mxu0 0
        %776 = vmatmul.mubr.bf16.gmra.mrb[0].mxu0 %v649
        %v777 = vpop.f32.mrb[0].mxu0
        %v778 = vadd.f32 0.0, %v777
        %v779 = vpop.f32.mrb[0].mxu0
        %v780 = vpop.f32.mrb[0].mxu0
        %v781 = vadd.f32 0.0, %v780
        %v782 = vpop.f32.mrb[0].mxu0
        %783 = vmatprep.mubr.bf16.mxu0 0
        %784 = vmatmul.mubr.bf16.gmra.mrb[0].mxu0 %v652
        %v785 = vpop.f32.mrb[0].mxu0
        %v786 = vadd.f32 0.0, %v785
        %v787 = vpop.f32.mrb[0].mxu0
        %v788 = vpop.f32.mrb[0].mxu0
        %v789 = vadd.f32 0.0, %v788
        %v790 = vpop.f32.mrb[0].mxu0
        %791 = vmatprep.mubr.bf16.mxu0 0
        %792 = vmatmul.mubr.bf16.gmra.mrb[0].mxu0 %v655
        %v793 = vpop.f32.mrb[0].mxu0
        %v794 = vadd.f32 0.0, %v793
        %v795 = vpop.f32.mrb[0].mxu0
        %v796 = vpop.f32.mrb[0].mxu0
        %v797 = vadd.f32 0.0, %v796
        %v798 = vpop.f32.mrb[0].mxu0
        %799 = vmatprep.mubr.bf16.mxu0 0
        %800 = vmatmul.mubr.bf16.gmra.mrb[0].mxu0 %v658
        %v801 = vpop.f32.mrb[0].mxu0
        %v802 = vadd.f32 0.0, %v801
        %v803 = vpop.f32.mrb[0].mxu0
        %v804 = vpop.f32.mrb[0].mxu0
        %v805 = vadd.f32 0.0, %v804
        %v806 = vpop.f32.mrb[0].mxu0
        %807 = vdwg.mxu0
        %v808 = vadd.f32 %v487, %v698
        %v809 = vadd.f32 %v488, %v701
        %v810 = vadd.f32 %v489, %v706
        %v811 = vadd.f32 %v490, %v709
        %v812 = vadd.f32 %v491, %v714
        %v813 = vadd.f32 %v492, %v717
        %v814 = vadd.f32 %v493, %v722
        %v815 = vadd.f32 %v494, %v725
        %v816 = vadd.f32 %v495, %v730
        %v817 = vadd.f32 %v496, %v733
        %v818 = vadd.f32 %v497, %v738
        %v819 = vadd.f32 %v498, %v741
        %v820 = vadd.f32 %v499, %v746
        %v821 = vadd.f32 %v500, %v749
        %v822 = vadd.f32 %v501, %v754
        %v823 = vadd.f32 %v502, %v757
        %v824 = vadd.f32 %v503, %v762
        %v825 = vadd.f32 %v504, %v765
        %v826 = vadd.f32 %v505, %v770
        %v827 = vadd.f32 %v506, %v773
        %v828 = vadd.f32 %v507, %v778
        %v829 = vadd.f32 %v508, %v781
        %v830 = vadd.f32 %v509, %v786
        %v831 = vadd.f32 %v510, %v789
        %v832 = vadd.f32 %v511, %v794
        %v833 = vadd.f32 %v512, %v797
        %v834 = vadd.f32 %v513, %v802
        %v835 = vadd.f32 %v514, %v805
        %v836 = vld [vmem:[%s169] sm:$0xe]
        %v838 = vunpack.c.l.b16 %v836
        %v839 = vpack.c.b16 %v254, %v838
        %vm840 = vcmask 1046528
        %v841 = vrot.slane %v839, 1
        %v842 = vrot.slane %v282, 1
        %v843 = vsel %vm840, %v841, %v842
        %v844 = vrot.slane %v283, 1
        %v845 = vsel %vm840, %v842, %v844
        %v846 = vrot.slane %v284, 1
        %v847 = vsel %vm840, %v844, %v846
        %v848 = vrot.slane %v285, 1
        %v849 = vsel %vm840, %v846, %v848
        %v850 = vrot.slane %v286, 1
        %v851 = vsel %vm840, %v848, %v850
        %v852 = vrot.slane %v287, 1
        %v853 = vsel %vm840, %v850, %v852
        %v854 = vrot.slane %v288, 1
        %v855 = vsel %vm840, %v852, %v854
        %v856 = vrot.slane %v289, 1
        %v857 = vsel %vm840, %v854, %v856
        %v858 = vrot.slane %v290, 1
        %v859 = vsel %vm840, %v856, %v858
        %v860 = vrot.slane %v291, 1
        %v861 = vsel %vm840, %v858, %v860
        %v862 = vrot.slane %v292, 1
        %v863 = vsel %vm840, %v860, %v862
        %v864 = vrot.slane %v293, 1
        %v865 = vsel %vm840, %v862, %v864
        %v866 = vrot.slane %v518, 1
        %v867 = vsel %vm840, %v864, %v866
        %v869 = vsel %vm295, %v843, 0
        %v872 = vsel %vm295, %v845, 0
        %v875 = vsel %vm295, %v847, 0
        %v878 = vsel %vm295, %v849, 0
        %v881 = vsel %vm295, %v851, 0
        %v884 = vsel %vm295, %v853, 0
        %v887 = vsel %vm295, %v855, 0
        %v890 = vsel %vm295, %v857, 0
        %v893 = vsel %vm295, %v859, 0
        %v896 = vsel %vm295, %v861, 0
        %v899 = vsel %vm295, %v863, 0
        %v902 = vsel %vm295, %v865, 0
        %v905 = vsel %vm295, %v867, 0
        %v908 = vsel %vm295, %v866, 0
        %v911 = vsel %vm338, %v178, 0
        %913 = vmatprep.subr.bf16.mxu0 0
        %914 = vmatpush1.bf16.msra.mxu0 %v911
        %915 = vmatprep.subr.bf16.mxu0 0
        %916 = vmatpush1.bf16.msra.mxu0 0
        %917 = vmatprep.subr.bf16.mxu0 0
        %918 = vmatpush1.bf16.msra.mxu0 0
        %919 = vmatprep.subr.bf16.mxu0 0
        %920 = vmatpush1.bf16.msra.mxu0 0
        %921 = vmatprep.subr.bf16.mxu0 0
        %922 = vmatpush1.bf16.msra.mxu0 0
        %923 = vmatprep.subr.bf16.mxu0 0
        %924 = vmatpush1.bf16.msra.mxu0 0
        %925 = vmatprep.subr.bf16.mxu0 0
        %926 = vmatpush1.bf16.msra.mxu0 0
        %927 = vmatprep.subr.bf16.mxu0 0
        %928 = vmatpush1.bf16.msra.mxu0 0
        %929 = vmatprep.subr.bf16.mxu0 0
        %930 = vmatpush1.bf16.msra.mxu0 0
        %931 = vmatprep.subr.bf16.mxu0 0
        %932 = vmatpush1.bf16.msra.mxu0 0
        %933 = vmatprep.subr.bf16.mxu0 0
        %934 = vmatpush1.bf16.msra.mxu0 0
        %935 = vmatprep.subr.bf16.mxu0 0
        %936 = vmatpush1.bf16.msra.mxu0 0
        %937 = vmatprep.subr.bf16.mxu0 0
        %938 = vmatpush1.bf16.msra.mxu0 0
        %939 = vmatprep.subr.bf16.mxu0 0
        %940 = vmatpush1.bf16.msra.mxu0 0
        %941 = vmatprep.subr.bf16.mxu0 0
        %942 = vmatpush1.bf16.msra.mxu0 0
        %943 = vmatprep.subr.bf16.mxu0 0
        %944 = vmatpush1.bf16.msra.mxu0 0
        %945 = vmatprep.mubr.bf16.mxu0 0
        %946 = vmatmul.mubr.bf16.gmra.mrb[0].mxu0 %v869
        %v947 = vpop.f32.mrb[0].mxu0
        %v948 = vadd.f32 0.0, %v947
        %v949 = vpop.f32.mrb[0].mxu0
        %v950 = vpop.f32.mrb[0].mxu0
        %v951 = vadd.f32 0.0, %v950
        %v952 = vpop.f32.mrb[0].mxu0
        %953 = vmatprep.mubr.bf16.mxu0 0
        %954 = vmatmul.mubr.bf16.gmra.mrb[0].mxu0 %v872
        %v955 = vpop.f32.mrb[0].mxu0
        %v956 = vadd.f32 0.0, %v955
        %v957 = vpop.f32.mrb[0].mxu0
        %v958 = vpop.f32.mrb[0].mxu0
        %v959 = vadd.f32 0.0, %v958
        %v960 = vpop.f32.mrb[0].mxu0
        %961 = vmatprep.mubr.bf16.mxu0 0
        %962 = vmatmul.mubr.bf16.gmra.mrb[0].mxu0 %v875
        %v963 = vpop.f32.mrb[0].mxu0
        %v964 = vadd.f32 0.0, %v963
        %v965 = vpop.f32.mrb[0].mxu0
        %v966 = vpop.f32.mrb[0].mxu0
        %v967 = vadd.f32 0.0, %v966
        %v968 = vpop.f32.mrb[0].mxu0
        %969 = vmatprep.mubr.bf16.mxu0 0
        %970 = vmatmul.mubr.bf16.gmra.mrb[0].mxu0 %v878
        %v971 = vpop.f32.mrb[0].mxu0
        %v972 = vadd.f32 0.0, %v971
        %v973 = vpop.f32.mrb[0].mxu0
        %v974 = vpop.f32.mrb[0].mxu0
        %v975 = vadd.f32 0.0, %v974
        %v976 = vpop.f32.mrb[0].mxu0
        %977 = vmatprep.mubr.bf16.mxu0 0
        %978 = vmatmul.mubr.bf16.gmra.mrb[0].mxu0 %v881
        %v979 = vpop.f32.mrb[0].mxu0
        %v980 = vadd.f32 0.0, %v979
        %v981 = vpop.f32.mrb[0].mxu0
        %v982 = vpop.f32.mrb[0].mxu0
        %v983 = vadd.f32 0.0, %v982
        %v984 = vpop.f32.mrb[0].mxu0
        %985 = vmatprep.mubr.bf16.mxu0 0
        %986 = vmatmul.mubr.bf16.gmra.mrb[0].mxu0 %v884
        %v987 = vpop.f32.mrb[0].mxu0
        %v988 = vadd.f32 0.0, %v987
        %v989 = vpop.f32.mrb[0].mxu0
        %v990 = vpop.f32.mrb[0].mxu0
        %v991 = vadd.f32 0.0, %v990
        %v992 = vpop.f32.mrb[0].mxu0
        %993 = vmatprep.mubr.bf16.mxu0 0
        %994 = vmatmul.mubr.bf16.gmra.mrb[0].mxu0 %v887
        %v995 = vpop.f32.mrb[0].mxu0
        %v996 = vadd.f32 0.0, %v995
        %v997 = vpop.f32.mrb[0].mxu0
        %v998 = vpop.f32.mrb[0].mxu0
        %v999 = vadd.f32 0.0, %v998
        %v1000 = vpop.f32.mrb[0].mxu0
        %1001 = vmatprep.mubr.bf16.mxu0 0
        %1002 = vmatmul.mubr.bf16.gmra.mrb[0].mxu0 %v890
        %v1003 = vpop.f32.mrb[0].mxu0
        %v1004 = vadd.f32 0.0, %v1003
        %v1005 = vpop.f32.mrb[0].mxu0
        %v1006 = vpop.f32.mrb[0].mxu0
        %v1007 = vadd.f32 0.0, %v1006
        %v1008 = vpop.f32.mrb[0].mxu0
        %1009 = vmatprep.mubr.bf16.mxu0 0
        %1010 = vmatmul.mubr.bf16.gmra.mrb[0].mxu0 %v893
        %v1011 = vpop.f32.mrb[0].mxu0
        %v1012 = vadd.f32 0.0, %v1011
        %v1013 = vpop.f32.mrb[0].mxu0
        %v1014 = vpop.f32.mrb[0].mxu0
        %v1015 = vadd.f32 0.0, %v1014
        %v1016 = vpop.f32.mrb[0].mxu0
        %1017 = vmatprep.mubr.bf16.mxu0 0
        %1018 = vmatmul.mubr.bf16.gmra.mrb[0].mxu0 %v896
        %v1019 = vpop.f32.mrb[0].mxu0
        %v1020 = vadd.f32 0.0, %v1019
        %v1021 = vpop.f32.mrb[0].mxu0
        %v1022 = vpop.f32.mrb[0].mxu0
        %v1023 = vadd.f32 0.0, %v1022
        %v1024 = vpop.f32.mrb[0].mxu0
        %1025 = vmatprep.mubr.bf16.mxu0 0
        %1026 = vmatmul.mubr.bf16.gmra.mrb[0].mxu0 %v899
        %v1027 = vpop.f32.mrb[0].mxu0
        %v1028 = vadd.f32 0.0, %v1027
        %v1029 = vpop.f32.mrb[0].mxu0
        %v1030 = vpop.f32.mrb[0].mxu0
        %v1031 = vadd.f32 0.0, %v1030
        %v1032 = vpop.f32.mrb[0].mxu0
        %1033 = vmatprep.mubr.bf16.mxu0 0
        %1034 = vmatmul.mubr.bf16.gmra.mrb[0].mxu0 %v902
        %v1035 = vpop.f32.mrb[0].mxu0
        %v1036 = vadd.f32 0.0, %v1035
        %v1037 = vpop.f32.mrb[0].mxu0
        %v1038 = vpop.f32.mrb[0].mxu0
        %v1039 = vadd.f32 0.0, %v1038
        %v1040 = vpop.f32.mrb[0].mxu0
        %1041 = vmatprep.mubr.bf16.mxu0 0
        %1042 = vmatmul.mubr.bf16.gmra.mrb[0].mxu0 %v905
        %v1043 = vpop.f32.mrb[0].mxu0
        %v1044 = vadd.f32 0.0, %v1043
        %v1045 = vpop.f32.mrb[0].mxu0
        %v1046 = vpop.f32.mrb[0].mxu0
        %v1047 = vadd.f32 0.0, %v1046
        %v1048 = vpop.f32.mrb[0].mxu0
        %1049 = vmatprep.mubr.bf16.mxu0 0
        %1050 = vmatmul.mubr.bf16.gmra.mrb[0].mxu0 %v908
        %v1051 = vpop.f32.mrb[0].mxu0
        %v1052 = vadd.f32 0.0, %v1051
        %v1053 = vpop.f32.mrb[0].mxu0
        %v1054 = vpop.f32.mrb[0].mxu0
        %v1055 = vadd.f32 0.0, %v1054
        %v1056 = vpop.f32.mrb[0].mxu0
        %1057 = vdwg.mxu0
        %v1058 = vadd.f32 %v808, %v948
        %v1059 = vadd.f32 %v809, %v951
        %v1060 = vadd.f32 %v810, %v956
        %v1061 = vadd.f32 %v811, %v959
        %v1062 = vadd.f32 %v812, %v964
        %v1063 = vadd.f32 %v813, %v967
        %v1064 = vadd.f32 %v814, %v972
        %v1065 = vadd.f32 %v815, %v975
        %v1066 = vadd.f32 %v816, %v980
        %v1067 = vadd.f32 %v817, %v983
        %v1068 = vadd.f32 %v818, %v988
        %v1069 = vadd.f32 %v819, %v991
        %v1070 = vadd.f32 %v820, %v996
        %v1071 = vadd.f32 %v821, %v999
        %v1072 = vadd.f32 %v822, %v1004
        %v1073 = vadd.f32 %v823, %v1007
        %v1074 = vadd.f32 %v824, %v1012
        %v1075 = vadd.f32 %v825, %v1015
        %v1076 = vadd.f32 %v826, %v1020
        %v1077 = vadd.f32 %v827, %v1023
        %v1078 = vadd.f32 %v828, %v1028
        %v1079 = vadd.f32 %v829, %v1031
        %v1080 = vadd.f32 %v830, %v1036
        %v1081 = vadd.f32 %v831, %v1039
        %v1082 = vadd.f32 %v832, %v1044
        %v1083 = vadd.f32 %v833, %v1047
        %v1084 = vadd.f32 %v834, %v1052
        %v1085 = vadd.f32 %v835, %v1055
        %v1086 = vld [vmem:[%s169 + $0x8] sm:$0xf]
        %v1087 = vld [vmem:[%s169 + $0xc] sm:$0xf]
        %v1088 = vld [vmem:[%s169 + $0x10] sm:$0xf]
        %v1089 = vld [vmem:[%s169 + $0x14] sm:$0xf]
        %v1090 = vld [vmem:[%s169 + $0x18] sm:$0xf]
        %v1091 = vld [vmem:[%s169 + $0x1c] sm:$0xf]
        %v1092 = vld [vmem:[%s169 + $0x20] sm:$0xf]
        %v1093 = vld [vmem:[%s169 + $0x24] sm:$0xf]
        %v1094 = vld [vmem:[%s169 + $0x28] sm:$0xf]
        %v1095 = vld [vmem:[%s169 + $0x2c] sm:$0xf]
        %v1096 = vld [vmem:[%s169 + $0x30] sm:$0xf]
        %v1097 = vld [vmem:[%s169 + $0x34] sm:$0xf]
        %v1098 = vld [vmem:[%s169 + $0x38] sm:$0xf]
        %v1099 = vld [vmem:[%s169 + $0x3c] sm:$0xf]
        %v1100 = vld [vmem:[%s169 + $0x40] sm:$0xf]
        %v1101 = vld [vmem:[%s169 + $0x44] sm:$0xf]
        %v1102 = vld [vmem:[%s169 + $0x48] sm:$0xf]
        %v1103 = vld [vmem:[%s169 + $0x4c] sm:$0xf]
        %v1104 = vld [vmem:[%s169 + $0x50] sm:$0xf]
        %v1105 = vld [vmem:[%s169 + $0x54] sm:$0xf]
        %v1106 = vld [vmem:[%s169 + $0x58] sm:$0xf]
        %v1107 = vld [vmem:[%s169 + $0x5c] sm:$0xf]
        %v1108 = vld [vmem:[%s169 + $0x60] sm:$0xf]
        %v1109 = vld [vmem:[%s169 + $0x64] sm:$0xf]
        %v1110 = vld [vmem:[%s169 + $0x68] sm:$0xf]
        %v1111 = vld [vmem:[%s169 + $0x6c] sm:$0xf]
        %v1112 = vld [vmem:[%s169 + $0x70] sm:$0xf]
        %v1113 = vld [vmem:[%s169 + $0x74] sm:$0x7]
        %v1142 = vunpack.c.l.b16 %v1086
        %v1143 = vunpack.c.l.b16 %v1087
        %v1144 = vunpack.c.l.b16 %v1088
        %v1145 = vunpack.c.l.b16 %v1089
        %v1146 = vunpack.c.l.b16 %v1090
        %v1147 = vunpack.c.l.b16 %v1091
        %v1148 = vunpack.c.l.b16 %v1092
        %v1149 = vunpack.c.l.b16 %v1093
        %v1150 = vunpack.c.l.b16 %v1094
        %v1151 = vunpack.c.l.b16 %v1095
        %v1152 = vunpack.c.l.b16 %v1096
        %v1153 = vunpack.c.l.b16 %v1097
        %v1154 = vunpack.c.l.b16 %v1098
        %v1155 = vunpack.c.l.b16 %v1099
        %v1156 = vunpack.c.l.b16 %v1100
        %v1157 = vunpack.c.l.b16 %v1101
        %v1158 = vunpack.c.l.b16 %v1102
        %v1159 = vunpack.c.l.b16 %v1103
        %v1160 = vunpack.c.l.b16 %v1104
        %v1161 = vunpack.c.l.b16 %v1105
        %v1162 = vunpack.c.l.b16 %v1106
        %v1163 = vunpack.c.l.b16 %v1107
        %v1164 = vunpack.c.l.b16 %v1108
        %v1165 = vunpack.c.l.b16 %v1109
        %v1166 = vunpack.c.l.b16 %v1110
        %v1167 = vunpack.c.l.b16 %v1111
        %v1168 = vunpack.c.l.b16 %v1112
        %v1169 = vunpack.c.l.b16 %v1113
        %v1170 = vpack.c.b16 %v1143, %v1142
        %v1171 = vpack.c.b16 %v1145, %v1144
        %v1172 = vpack.c.b16 %v1147, %v1146
        %v1173 = vpack.c.b16 %v1149, %v1148
        %v1174 = vpack.c.b16 %v1151, %v1150
        %v1175 = vpack.c.b16 %v1153, %v1152
        %v1176 = vpack.c.b16 %v1155, %v1154
        %v1177 = vpack.c.b16 %v1157, %v1156
        %v1178 = vpack.c.b16 %v1159, %v1158
        %v1179 = vpack.c.b16 %v1161, %v1160
        %v1180 = vpack.c.b16 %v1163, %v1162
        %v1181 = vpack.c.b16 %v1165, %v1164
        %v1182 = vpack.c.b16 %v1167, %v1166
        %v1183 = vpack.c.b16 %v1169, %v1168
        %v1185 = vsel %vm295, %v1170, 0
        %v1188 = vsel %vm295, %v1171, 0
        %v1191 = vsel %vm295, %v1172, 0
        %v1194 = vsel %vm295, %v1173, 0
        %v1197 = vsel %vm295, %v1174, 0
        %v1200 = vsel %vm295, %v1175, 0
        %v1203 = vsel %vm295, %v1176, 0
        %v1206 = vsel %vm295, %v1177, 0
        %v1209 = vsel %vm295, %v1178, 0
        %v1212 = vsel %vm295, %v1179, 0
        %v1215 = vsel %vm295, %v1180, 0
        %v1218 = vsel %vm295, %v1181, 0
        %v1221 = vsel %vm295, %v1182, 0
        %v1224 = vsel %vm295, %v1183, 0
        %v1227 = vsel %vm338, %v180, 0
        %1229 = vmatprep.subr.bf16.mxu0 0
        %1230 = vmatpush1.bf16.msra.mxu0 %v1227
        %1231 = vmatprep.subr.bf16.mxu0 0
        %1232 = vmatpush1.bf16.msra.mxu0 0
        %1233 = vmatprep.subr.bf16.mxu0 0
        %1234 = vmatpush1.bf16.msra.mxu0 0
        %1235 = vmatprep.subr.bf16.mxu0 0
        %1236 = vmatpush1.bf16.msra.mxu0 0
        %1237 = vmatprep.subr.bf16.mxu0 0
        %1238 = vmatpush1.bf16.msra.mxu0 0
        %1239 = vmatprep.subr.bf16.mxu0 0
        %1240 = vmatpush1.bf16.msra.mxu0 0
        %1241 = vmatprep.subr.bf16.mxu0 0
        %1242 = vmatpush1.bf16.msra.mxu0 0
        %1243 = vmatprep.subr.bf16.mxu0 0
        %1244 = vmatpush1.bf16.msra.mxu0 0
        %1245 = vmatprep.subr.bf16.mxu0 0
        %1246 = vmatpush1.bf16.msra.mxu0 0
        %1247 = vmatprep.subr.bf16.mxu0 0
        %1248 = vmatpush1.bf16.msra.mxu0 0
        %1249 = vmatprep.subr.bf16.mxu0 0
        %1250 = vmatpush1.bf16.msra.mxu0 0
        %1251 = vmatprep.subr.bf16.mxu0 0
        %1252 = vmatpush1.bf16.msra.mxu0 0
        %1253 = vmatprep.subr.bf16.mxu0 0
        %1254 = vmatpush1.bf16.msra.mxu0 0
        %1255 = vmatprep.subr.bf16.mxu0 0
        %1256 = vmatpush1.bf16.msra.mxu0 0
        %1257 = vmatprep.subr.bf16.mxu0 0
        %1258 = vmatpush1.bf16.msra.mxu0 0
        %1259 = vmatprep.subr.bf16.mxu0 0
        %1260 = vmatpush1.bf16.msra.mxu0 0
        %1261 = vmatprep.mubr.bf16.mxu0 0
        %1262 = vmatmul.mubr.bf16.gmra.mrb[0].mxu0 %v1185
        %v1263 = vpop.f32.mrb[0].mxu0
        %v1264 = vadd.f32 0.0, %v1263
        %v1265 = vpop.f32.mrb[0].mxu0
        %v1266 = vpop.f32.mrb[0].mxu0
        %v1267 = vadd.f32 0.0, %v1266
        %v1268 = vpop.f32.mrb[0].mxu0
        %1269 = vmatprep.mubr.bf16.mxu0 0
        %1270 = vmatmul.mubr.bf16.gmra.mrb[0].mxu0 %v1188
        %v1271 = vpop.f32.mrb[0].mxu0
        %v1272 = vadd.f32 0.0, %v1271
        %v1273 = vpop.f32.mrb[0].mxu0
        %v1274 = vpop.f32.mrb[0].mxu0
        %v1275 = vadd.f32 0.0, %v1274
        %v1276 = vpop.f32.mrb[0].mxu0
        %1277 = vmatprep.mubr.bf16.mxu0 0
        %1278 = vmatmul.mubr.bf16.gmra.mrb[0].mxu0 %v1191
        %v1279 = vpop.f32.mrb[0].mxu0
        %v1280 = vadd.f32 0.0, %v1279
        %v1281 = vpop.f32.mrb[0].mxu0
        %v1282 = vpop.f32.mrb[0].mxu0
        %v1283 = vadd.f32 0.0, %v1282
        %v1284 = vpop.f32.mrb[0].mxu0
        %1285 = vmatprep.mubr.bf16.mxu0 0
        %1286 = vmatmul.mubr.bf16.gmra.mrb[0].mxu0 %v1194
        %v1287 = vpop.f32.mrb[0].mxu0
        %v1288 = vadd.f32 0.0, %v1287
        %v1289 = vpop.f32.mrb[0].mxu0
        %v1290 = vpop.f32.mrb[0].mxu0
        %v1291 = vadd.f32 0.0, %v1290
        %v1292 = vpop.f32.mrb[0].mxu0
        %1293 = vmatprep.mubr.bf16.mxu0 0
        %1294 = vmatmul.mubr.bf16.gmra.mrb[0].mxu0 %v1197
        %v1295 = vpop.f32.mrb[0].mxu0
        %v1296 = vadd.f32 0.0, %v1295
        %v1297 = vpop.f32.mrb[0].mxu0
        %v1298 = vpop.f32.mrb[0].mxu0
        %v1299 = vadd.f32 0.0, %v1298
        %v1300 = vpop.f32.mrb[0].mxu0
        %1301 = vmatprep.mubr.bf16.mxu0 0
        %1302 = vmatmul.mubr.bf16.gmra.mrb[0].mxu0 %v1200
        %v1303 = vpop.f32.mrb[0].mxu0
        %v1304 = vadd.f32 0.0, %v1303
        %v1305 = vpop.f32.mrb[0].mxu0
        %v1306 = vpop.f32.mrb[0].mxu0
        %v1307 = vadd.f32 0.0, %v1306
        %v1308 = vpop.f32.mrb[0].mxu0
        %1309 = vmatprep.mubr.bf16.mxu0 0
        %1310 = vmatmul.mubr.bf16.gmra.mrb[0].mxu0 %v1203
        %v1311 = vpop.f32.mrb[0].mxu0
        %v1312 = vadd.f32 0.0, %v1311
        %v1313 = vpop.f32.mrb[0].mxu0
        %v1314 = vpop.f32.mrb[0].mxu0
        %v1315 = vadd.f32 0.0, %v1314
        %v1316 = vpop.f32.mrb[0].mxu0
        %1317 = vmatprep.mubr.bf16.mxu0 0
        %1318 = vmatmul.mubr.bf16.gmra.mrb[0].mxu0 %v1206
        %v1319 = vpop.f32.mrb[0].mxu0
        %v1320 = vadd.f32 0.0, %v1319
        %v1321 = vpop.f32.mrb[0].mxu0
        %v1322 = vpop.f32.mrb[0].mxu0
        %v1323 = vadd.f32 0.0, %v1322
        %v1324 = vpop.f32.mrb[0].mxu0
        %1325 = vmatprep.mubr.bf16.mxu0 0
        %1326 = vmatmul.mubr.bf16.gmra.mrb[0].mxu0 %v1209
        %v1327 = vpop.f32.mrb[0].mxu0
        %v1328 = vadd.f32 0.0, %v1327
        %v1329 = vpop.f32.mrb[0].mxu0
        %v1330 = vpop.f32.mrb[0].mxu0
        %v1331 = vadd.f32 0.0, %v1330
        %v1332 = vpop.f32.mrb[0].mxu0
        %1333 = vmatprep.mubr.bf16.mxu0 0
        %1334 = vmatmul.mubr.bf16.gmra.mrb[0].mxu0 %v1212
        %v1335 = vpop.f32.mrb[0].mxu0
        %v1336 = vadd.f32 0.0, %v1335
        %v1337 = vpop.f32.mrb[0].mxu0
        %v1338 = vpop.f32.mrb[0].mxu0
        %v1339 = vadd.f32 0.0, %v1338
        %v1340 = vpop.f32.mrb[0].mxu0
        %1341 = vmatprep.mubr.bf16.mxu0 0
        %1342 = vmatmul.mubr.bf16.gmra.mrb[0].mxu0 %v1215
        %v1343 = vpop.f32.mrb[0].mxu0
        %v1344 = vadd.f32 0.0, %v1343
        %v1345 = vpop.f32.mrb[0].mxu0
        %v1346 = vpop.f32.mrb[0].mxu0
        %v1347 = vadd.f32 0.0, %v1346
        %v1348 = vpop.f32.mrb[0].mxu0
        %1349 = vmatprep.mubr.bf16.mxu0 0
        %1350 = vmatmul.mubr.bf16.gmra.mrb[0].mxu0 %v1218
        %v1351 = vpop.f32.mrb[0].mxu0
        %v1352 = vadd.f32 0.0, %v1351
        %v1353 = vpop.f32.mrb[0].mxu0
        %v1354 = vpop.f32.mrb[0].mxu0
        %v1355 = vadd.f32 0.0, %v1354
        %v1356 = vpop.f32.mrb[0].mxu0
        %1357 = vmatprep.mubr.bf16.mxu0 0
        %1358 = vmatmul.mubr.bf16.gmra.mrb[0].mxu0 %v1221
        %v1359 = vpop.f32.mrb[0].mxu0
        %v1360 = vadd.f32 0.0, %v1359
        %v1361 = vpop.f32.mrb[0].mxu0
        %v1362 = vpop.f32.mrb[0].mxu0
        %v1363 = vadd.f32 0.0, %v1362
        %v1364 = vpop.f32.mrb[0].mxu0
        %1365 = vmatprep.mubr.bf16.mxu0 0
        %1366 = vmatmul.mubr.bf16.gmra.mrb[0].mxu0 %v1224
        %v1367 = vpop.f32.mrb[0].mxu0
        %v1368 = vadd.f32 0.0, %v1367
        %v1369 = vpop.f32.mrb[0].mxu0
        %v1370 = vpop.f32.mrb[0].mxu0
        %v1371 = vadd.f32 0.0, %v1370
        %v1372 = vpop.f32.mrb[0].mxu0
        %1373 = vdwg.mxu0
        %v1374 = vadd.f32 %v1058, %v1264
        %v1375 = vadd.f32 %v1059, %v1267
        %v1376 = vadd.f32 %v1060, %v1272
        %v1377 = vadd.f32 %v1061, %v1275
        %v1378 = vadd.f32 %v1062, %v1280
        %v1379 = vadd.f32 %v1063, %v1283
        %v1380 = vadd.f32 %v1064, %v1288
        %v1381 = vadd.f32 %v1065, %v1291
        %v1382 = vadd.f32 %v1066, %v1296
        %v1383 = vadd.f32 %v1067, %v1299
        %v1384 = vadd.f32 %v1068, %v1304
        %v1385 = vadd.f32 %v1069, %v1307
        %v1386 = vadd.f32 %v1070, %v1312
        %v1387 = vadd.f32 %v1071, %v1315
        %v1388 = vadd.f32 %v1072, %v1320
        %v1389 = vadd.f32 %v1073, %v1323
        %v1390 = vadd.f32 %v1074, %v1328
        %v1391 = vadd.f32 %v1075, %v1331
        %v1392 = vadd.f32 %v1076, %v1336
        %v1393 = vadd.f32 %v1077, %v1339
        %v1394 = vadd.f32 %v1078, %v1344
        %v1395 = vadd.f32 %v1079, %v1347
        %v1396 = vadd.f32 %v1080, %v1352
        %v1397 = vadd.f32 %v1081, %v1355
        %v1398 = vadd.f32 %v1082, %v1360
        %v1399 = vadd.f32 %v1083, %v1363
        %v1400 = vadd.f32 %v1084, %v1368
        %v1401 = vadd.f32 %v1085, %v1371
        %v1402 = vld [vmem:[%s169 + $0x74] sm:$0xf]
        %v1404 = vunpack.c.l.b16 %v1402
        %v1405 = vpack.c.b16 %v1404, %v1168
        %v1406 = vshrl.u32 %v1170, 16
        %v1408 = vshll.u32 %v1170, 16
        %v1410 = vrot.slane %v1408, 1
        %v1411 = vor.u32 %v1406, %v1410
        %v1412 = vshll.u32 %v1171, 16
        %v1414 = vrot.slane %v1412, 1
        %v1415 = vsel %vm519, %v1411, %v1414
        %v1416 = vshrl.u32 %v1171, 16
        %v1418 = vor.u32 %v1416, %v1414
        %v1419 = vshll.u32 %v1172, 16
        %v1421 = vrot.slane %v1419, 1
        %v1422 = vsel %vm519, %v1418, %v1421
        %v1423 = vshrl.u32 %v1172, 16
        %v1425 = vor.u32 %v1423, %v1421
        %v1426 = vshll.u32 %v1173, 16
        %v1428 = vrot.slane %v1426, 1
        %v1429 = vsel %vm519, %v1425, %v1428
        %v1430 = vshrl.u32 %v1173, 16
        %v1432 = vor.u32 %v1430, %v1428
        %v1433 = vshll.u32 %v1174, 16
        %v1435 = vrot.slane %v1433, 1
        %v1436 = vsel %vm519, %v1432, %v1435
        %v1437 = vshrl.u32 %v1174, 16
        %v1439 = vor.u32 %v1437, %v1435
        %v1440 = vshll.u32 %v1175, 16
        %v1442 = vrot.slane %v1440, 1
        %v1443 = vsel %vm519, %v1439, %v1442
        %v1444 = vshrl.u32 %v1175, 16
        %v1446 = vor.u32 %v1444, %v1442
        %v1447 = vshll.u32 %v1176, 16
        %v1449 = vrot.slane %v1447, 1
        %v1450 = vsel %vm519, %v1446, %v1449
        %v1451 = vshrl.u32 %v1176, 16
        %v1453 = vor.u32 %v1451, %v1449
        %v1454 = vshll.u32 %v1177, 16
        %v1456 = vrot.slane %v1454, 1
        %v1457 = vsel %vm519, %v1453, %v1456
        %v1458 = vshrl.u32 %v1177, 16
        %v1460 = vor.u32 %v1458, %v1456
        %v1461 = vshll.u32 %v1178, 16
        %v1463 = vrot.slane %v1461, 1
        %v1464 = vsel %vm519, %v1460, %v1463
        %v1465 = vshrl.u32 %v1178, 16
        %v1467 = vor.u32 %v1465, %v1463
        %v1468 = vshll.u32 %v1179, 16
        %v1470 = vrot.slane %v1468, 1
        %v1471 = vsel %vm519, %v1467, %v1470
        %v1472 = vshrl.u32 %v1179, 16
        %v1474 = vor.u32 %v1472, %v1470
        %v1475 = vshll.u32 %v1180, 16
        %v1477 = vrot.slane %v1475, 1
        %v1478 = vsel %vm519, %v1474, %v1477
        %v1479 = vshrl.u32 %v1180, 16
        %v1481 = vor.u32 %v1479, %v1477
        %v1482 = vshll.u32 %v1181, 16
        %v1484 = vrot.slane %v1482, 1
        %v1485 = vsel %vm519, %v1481, %v1484
        %v1486 = vshrl.u32 %v1181, 16
        %v1488 = vor.u32 %v1486, %v1484
        %v1489 = vshll.u32 %v1182, 16
        %v1491 = vrot.slane %v1489, 1
        %v1492 = vsel %vm519, %v1488, %v1491
        %v1493 = vshrl.u32 %v1182, 16
        %v1495 = vor.u32 %v1493, %v1491
        %v1497 = vshll.u32 %v1405, 16
        %v1499 = vrot.slane %v1497, 1
        %v1500 = vsel %vm519, %v1495, %v1499
        %v1501 = vshrl.u32 %v1405, 16
        %v1503 = vor.u32 %v1501, %v1499
        %v1505 = vsel %vm295, %v1415, 0
        %v1508 = vsel %vm295, %v1422, 0
        %v1511 = vsel %vm295, %v1429, 0
        %v1514 = vsel %vm295, %v1436, 0
        %v1517 = vsel %vm295, %v1443, 0
        %v1520 = vsel %vm295, %v1450, 0
        %v1523 = vsel %vm295, %v1457, 0
        %v1526 = vsel %vm295, %v1464, 0
        %v1529 = vsel %vm295, %v1471, 0
        %v1532 = vsel %vm295, %v1478, 0
        %v1535 = vsel %vm295, %v1485, 0
        %v1538 = vsel %vm295, %v1492, 0
        %v1541 = vsel %vm295, %v1500, 0
        %v1544 = vsel %vm295, %v1503, 0
        %v1547 = vsel %vm338, %v182, 0
        %1549 = vmatprep.subr.bf16.mxu0 0
        %1550 = vmatpush1.bf16.msra.mxu0 %v1547
        %1551 = vmatprep.subr.bf16.mxu0 0
        %1552 = vmatpush1.bf16.msra.mxu0 0
        %1553 = vmatprep.subr.bf16.mxu0 0
        %1554 = vmatpush1.bf16.msra.mxu0 0
        %1555 = vmatprep.subr.bf16.mxu0 0
        %1556 = vmatpush1.bf16.msra.mxu0 0
        %1557 = vmatprep.subr.bf16.mxu0 0
        %1558 = vmatpush1.bf16.msra.mxu0 0
        %1559 = vmatprep.subr.bf16.mxu0 0
        %1560 = vmatpush1.bf16.msra.mxu0 0
        %1561 = vmatprep.subr.bf16.mxu0 0
        %1562 = vmatpush1.bf16.msra.mxu0 0
        %1563 = vmatprep.subr.bf16.mxu0 0
        %1564 = vmatpush1.bf16.msra.mxu0 0
        %1565 = vmatprep.subr.bf16.mxu0 0
        %1566 = vmatpush1.bf16.msra.mxu0 0
        %1567 = vmatprep.subr.bf16.mxu0 0
        %1568 = vmatpush1.bf16.msra.mxu0 0
        %1569 = vmatprep.subr.bf16.mxu0 0
        %1570 = vmatpush1.bf16.msra.mxu0 0
        %1571 = vmatprep.subr.bf16.mxu0 0
        %1572 = vmatpush1.bf16.msra.mxu0 0
        %1573 = vmatprep.subr.bf16.mxu0 0
        %1574 = vmatpush1.bf16.msra.mxu0 0
        %1575 = vmatprep.subr.bf16.mxu0 0
        %1576 = vmatpush1.bf16.msra.mxu0 0
        %1577 = vmatprep.subr.bf16.mxu0 0
        %1578 = vmatpush1.bf16.msra.mxu0 0
        %1579 = vmatprep.subr.bf16.mxu0 0
        %1580 = vmatpush1.bf16.msra.mxu0 0
        %1581 = vmatprep.mubr.bf16.mxu0 0
        %1582 = vmatmul.mubr.bf16.gmra.mrb[0].mxu0 %v1505
        %v1583 = vpop.f32.mrb[0].mxu0
        %v1584 = vadd.f32 0.0, %v1583
        %v1585 = vpop.f32.mrb[0].mxu0
        %v1586 = vpop.f32.mrb[0].mxu0
        %v1587 = vadd.f32 0.0, %v1586
        %v1588 = vpop.f32.mrb[0].mxu0
        %1589 = vmatprep.mubr.bf16.mxu0 0
        %1590 = vmatmul.mubr.bf16.gmra.mrb[0].mxu0 %v1508
        %v1591 = vpop.f32.mrb[0].mxu0
        %v1592 = vadd.f32 0.0, %v1591
        %v1593 = vpop.f32.mrb[0].mxu0
        %v1594 = vpop.f32.mrb[0].mxu0
        %v1595 = vadd.f32 0.0, %v1594
        %v1596 = vpop.f32.mrb[0].mxu0
        %1597 = vmatprep.mubr.bf16.mxu0 0
        %1598 = vmatmul.mubr.bf16.gmra.mrb[0].mxu0 %v1511
        %v1599 = vpop.f32.mrb[0].mxu0
        %v1600 = vadd.f32 0.0, %v1599
        %v1601 = vpop.f32.mrb[0].mxu0
        %v1602 = vpop.f32.mrb[0].mxu0
        %v1603 = vadd.f32 0.0, %v1602
        %v1604 = vpop.f32.mrb[0].mxu0
        %1605 = vmatprep.mubr.bf16.mxu0 0
        %1606 = vmatmul.mubr.bf16.gmra.mrb[0].mxu0 %v1514
        %v1607 = vpop.f32.mrb[0].mxu0
        %v1608 = vadd.f32 0.0, %v1607
        %v1609 = vpop.f32.mrb[0].mxu0
        %v1610 = vpop.f32.mrb[0].mxu0
        %v1611 = vadd.f32 0.0, %v1610
        %v1612 = vpop.f32.mrb[0].mxu0
        %1613 = vmatprep.mubr.bf16.mxu0 0
        %1614 = vmatmul.mubr.bf16.gmra.mrb[0].mxu0 %v1517
        %v1615 = vpop.f32.mrb[0].mxu0
        %v1616 = vadd.f32 0.0, %v1615
        %v1617 = vpop.f32.mrb[0].mxu0
        %v1618 = vpop.f32.mrb[0].mxu0
        %v1619 = vadd.f32 0.0, %v1618
        %v1620 = vpop.f32.mrb[0].mxu0
        %1621 = vmatprep.mubr.bf16.mxu0 0
        %1622 = vmatmul.mubr.bf16.gmra.mrb[0].mxu0 %v1520
        %v1623 = vpop.f32.mrb[0].mxu0
        %v1624 = vadd.f32 0.0, %v1623
        %v1625 = vpop.f32.mrb[0].mxu0
        %v1626 = vpop.f32.mrb[0].mxu0
        %v1627 = vadd.f32 0.0, %v1626
        %v1628 = vpop.f32.mrb[0].mxu0
        %1629 = vmatprep.mubr.bf16.mxu0 0
        %1630 = vmatmul.mubr.bf16.gmra.mrb[0].mxu0 %v1523
        %v1631 = vpop.f32.mrb[0].mxu0
        %v1632 = vadd.f32 0.0, %v1631
        %v1633 = vpop.f32.mrb[0].mxu0
        %v1634 = vpop.f32.mrb[0].mxu0
        %v1635 = vadd.f32 0.0, %v1634
        %v1636 = vpop.f32.mrb[0].mxu0
        %1637 = vmatprep.mubr.bf16.mxu0 0
        %1638 = vmatmul.mubr.bf16.gmra.mrb[0].mxu0 %v1526
        %v1639 = vpop.f32.mrb[0].mxu0
        %v1640 = vadd.f32 0.0, %v1639
        %v1641 = vpop.f32.mrb[0].mxu0
        %v1642 = vpop.f32.mrb[0].mxu0
        %v1643 = vadd.f32 0.0, %v1642
        %v1644 = vpop.f32.mrb[0].mxu0
        %1645 = vmatprep.mubr.bf16.mxu0 0
        %1646 = vmatmul.mubr.bf16.gmra.mrb[0].mxu0 %v1529
        %v1647 = vpop.f32.mrb[0].mxu0
        %v1648 = vadd.f32 0.0, %v1647
        %v1649 = vpop.f32.mrb[0].mxu0
        %v1650 = vpop.f32.mrb[0].mxu0
        %v1651 = vadd.f32 0.0, %v1650
        %v1652 = vpop.f32.mrb[0].mxu0
        %1653 = vmatprep.mubr.bf16.mxu0 0
        %1654 = vmatmul.mubr.bf16.gmra.mrb[0].mxu0 %v1532
        %v1655 = vpop.f32.mrb[0].mxu0
        %v1656 = vadd.f32 0.0, %v1655
        %v1657 = vpop.f32.mrb[0].mxu0
        %v1658 = vpop.f32.mrb[0].mxu0
        %v1659 = vadd.f32 0.0, %v1658
        %v1660 = vpop.f32.mrb[0].mxu0
        %1661 = vmatprep.mubr.bf16.mxu0 0
        %1662 = vmatmul.mubr.bf16.gmra.mrb[0].mxu0 %v1535
        %v1663 = vpop.f32.mrb[0].mxu0
        %v1664 = vadd.f32 0.0, %v1663
        %v1665 = vpop.f32.mrb[0].mxu0
        %v1666 = vpop.f32.mrb[0].mxu0
        %v1667 = vadd.f32 0.0, %v1666
        %v1668 = vpop.f32.mrb[0].mxu0
        %1669 = vmatprep.mubr.bf16.mxu0 0
        %1670 = vmatmul.mubr.bf16.gmra.mrb[0].mxu0 %v1538
        %v1671 = vpop.f32.mrb[0].mxu0
        %v1672 = vadd.f32 0.0, %v1671
        %v1673 = vpop.f32.mrb[0].mxu0
        %v1674 = vpop.f32.mrb[0].mxu0
        %v1675 = vadd.f32 0.0, %v1674
        %v1676 = vpop.f32.mrb[0].mxu0
        %1677 = vmatprep.mubr.bf16.mxu0 0
        %1678 = vmatmul.mubr.bf16.gmra.mrb[0].mxu0 %v1541
        %v1679 = vpop.f32.mrb[0].mxu0
        %v1680 = vadd.f32 0.0, %v1679
        %v1681 = vpop.f32.mrb[0].mxu0
        %v1682 = vpop.f32.mrb[0].mxu0
        %v1683 = vadd.f32 0.0, %v1682
        %v1684 = vpop.f32.mrb[0].mxu0
        %1685 = vmatprep.mubr.bf16.mxu0 0
        %1686 = vmatmul.mubr.bf16.gmra.mrb[0].mxu0 %v1544
        %v1687 = vpop.f32.mrb[0].mxu0
        %v1688 = vadd.f32 0.0, %v1687
        %v1689 = vpop.f32.mrb[0].mxu0
        %v1690 = vpop.f32.mrb[0].mxu0
        %v1691 = vadd.f32 0.0, %v1690
        %v1692 = vpop.f32.mrb[0].mxu0
        %1693 = vdwg.mxu0
        %v1694 = vadd.f32 %v1374, %v1584
        %v1695 = vadd.f32 %v1375, %v1587
        %v1696 = vadd.f32 %v1376, %v1592
        %v1697 = vadd.f32 %v1377, %v1595
        %v1698 = vadd.f32 %v1378, %v1600
        %v1699 = vadd.f32 %v1379, %v1603
        %v1700 = vadd.f32 %v1380, %v1608
        %v1701 = vadd.f32 %v1381, %v1611
        %v1702 = vadd.f32 %v1382, %v1616
        %v1703 = vadd.f32 %v1383, %v1619
        %v1704 = vadd.f32 %v1384, %v1624
        %v1705 = vadd.f32 %v1385, %v1627
        %v1706 = vadd.f32 %v1386, %v1632
        %v1707 = vadd.f32 %v1387, %v1635
        %v1708 = vadd.f32 %v1388, %v1640
        %v1709 = vadd.f32 %v1389, %v1643
        %v1710 = vadd.f32 %v1390, %v1648
        %v1711 = vadd.f32 %v1391, %v1651
        %v1712 = vadd.f32 %v1392, %v1656
        %v1713 = vadd.f32 %v1393, %v1659
        %v1714 = vadd.f32 %v1394, %v1664
        %v1715 = vadd.f32 %v1395, %v1667
        %v1716 = vadd.f32 %v1396, %v1672
        %v1717 = vadd.f32 %v1397, %v1675
        %v1718 = vadd.f32 %v1398, %v1680
        %v1719 = vadd.f32 %v1399, %v1683
        %v1720 = vadd.f32 %v1400, %v1688
        %v1721 = vadd.f32 %v1401, %v1691
        %v1722 = vld [vmem:[%s169 + $0x8] sm:$0xe]
        %v1724 = vunpack.c.l.b16 %v1722
        %v1725 = vpack.c.b16 %v1143, %v1724
        %v1726 = vrot.slane %v1725, 1
        %v1727 = vrot.slane %v1171, 1
        %v1728 = vsel %vm840, %v1726, %v1727
        %v1729 = vrot.slane %v1172, 1
        %v1730 = vsel %vm840, %v1727, %v1729
        %v1731 = vrot.slane %v1173, 1
        %v1732 = vsel %vm840, %v1729, %v1731
        %v1733 = vrot.slane %v1174, 1
        %v1734 = vsel %vm840, %v1731, %v1733
        %v1735 = vrot.slane %v1175, 1
        %v1736 = vsel %vm840, %v1733, %v1735
        %v1737 = vrot.slane %v1176, 1
        %v1738 = vsel %vm840, %v1735, %v1737
        %v1739 = vrot.slane %v1177, 1
        %v1740 = vsel %vm840, %v1737, %v1739
        %v1741 = vrot.slane %v1178, 1
        %v1742 = vsel %vm840, %v1739, %v1741
        %v1743 = vrot.slane %v1179, 1
        %v1744 = vsel %vm840, %v1741, %v1743
        %v1745 = vrot.slane %v1180, 1
        %v1746 = vsel %vm840, %v1743, %v1745
        %v1747 = vrot.slane %v1181, 1
        %v1748 = vsel %vm840, %v1745, %v1747
        %v1749 = vrot.slane %v1182, 1
        %v1750 = vsel %vm840, %v1747, %v1749
        %v1751 = vrot.slane %v1405, 1
        %v1752 = vsel %vm840, %v1749, %v1751
        %v1754 = vsel %vm295, %v1728, 0
        %v1757 = vsel %vm295, %v1730, 0
        %v1760 = vsel %vm295, %v1732, 0
        %v1763 = vsel %vm295, %v1734, 0
        %v1766 = vsel %vm295, %v1736, 0
        %v1769 = vsel %vm295, %v1738, 0
        %v1772 = vsel %vm295, %v1740, 0
        %v1775 = vsel %vm295, %v1742, 0
        %v1778 = vsel %vm295, %v1744, 0
        %v1781 = vsel %vm295, %v1746, 0
        %v1784 = vsel %vm295, %v1748, 0
        %v1787 = vsel %vm295, %v1750, 0
        %v1790 = vsel %vm295, %v1752, 0
        %v1793 = vsel %vm295, %v1751, 0
        %v1796 = vsel %vm338, %v184, 0
        %1798 = vmatprep.subr.bf16.mxu0 0
        %1799 = vmatpush1.bf16.msra.mxu0 %v1796
        %1800 = vmatprep.subr.bf16.mxu0 0
        %1801 = vmatpush1.bf16.msra.mxu0 0
        %1802 = vmatprep.subr.bf16.mxu0 0
        %1803 = vmatpush1.bf16.msra.mxu0 0
        %1804 = vmatprep.subr.bf16.mxu0 0
        %1805 = vmatpush1.bf16.msra.mxu0 0
        %1806 = vmatprep.subr.bf16.mxu0 0
        %1807 = vmatpush1.bf16.msra.mxu0 0
        %1808 = vmatprep.subr.bf16.mxu0 0
        %1809 = vmatpush1.bf16.msra.mxu0 0
        %1810 = vmatprep.subr.bf16.mxu0 0
        %1811 = vmatpush1.bf16.msra.mxu0 0
        %1812 = vmatprep.subr.bf16.mxu0 0
        %1813 = vmatpush1.bf16.msra.mxu0 0
        %1814 = vmatprep.subr.bf16.mxu0 0
        %1815 = vmatpush1.bf16.msra.mxu0 0
        %1816 = vmatprep.subr.bf16.mxu0 0
        %1817 = vmatpush1.bf16.msra.mxu0 0
        %1818 = vmatprep.subr.bf16.mxu0 0
        %1819 = vmatpush1.bf16.msra.mxu0 0
        %1820 = vmatprep.subr.bf16.mxu0 0
        %1821 = vmatpush1.bf16.msra.mxu0 0
        %1822 = vmatprep.subr.bf16.mxu0 0
        %1823 = vmatpush1.bf16.msra.mxu0 0
        %1824 = vmatprep.subr.bf16.mxu0 0
        %1825 = vmatpush1.bf16.msra.mxu0 0
        %1826 = vmatprep.subr.bf16.mxu0 0
        %1827 = vmatpush1.bf16.msra.mxu0 0
        %1828 = vmatprep.subr.bf16.mxu0 0
        %1829 = vmatpush1.bf16.msra.mxu0 0
        %1830 = vmatprep.mubr.bf16.mxu0 0
        %1831 = vmatmul.mubr.bf16.gmra.mrb[0].mxu0 %v1754
        %v1832 = vpop.f32.mrb[0].mxu0
        %v1833 = vadd.f32 0.0, %v1832
        %v1834 = vpop.f32.mrb[0].mxu0
        %v1835 = vpop.f32.mrb[0].mxu0
        %v1836 = vadd.f32 0.0, %v1835
        %v1837 = vpop.f32.mrb[0].mxu0
        %1838 = vmatprep.mubr.bf16.mxu0 0
        %1839 = vmatmul.mubr.bf16.gmra.mrb[0].mxu0 %v1757
        %v1840 = vpop.f32.mrb[0].mxu0
        %v1841 = vadd.f32 0.0, %v1840
        %v1842 = vpop.f32.mrb[0].mxu0
        %v1843 = vpop.f32.mrb[0].mxu0
        %v1844 = vadd.f32 0.0, %v1843
        %v1845 = vpop.f32.mrb[0].mxu0
        %1846 = vmatprep.mubr.bf16.mxu0 0
        %1847 = vmatmul.mubr.bf16.gmra.mrb[0].mxu0 %v1760
        %v1848 = vpop.f32.mrb[0].mxu0
        %v1849 = vadd.f32 0.0, %v1848
        %v1850 = vpop.f32.mrb[0].mxu0
        %v1851 = vpop.f32.mrb[0].mxu0
        %v1852 = vadd.f32 0.0, %v1851
        %v1853 = vpop.f32.mrb[0].mxu0
        %1854 = vmatprep.mubr.bf16.mxu0 0
        %1855 = vmatmul.mubr.bf16.gmra.mrb[0].mxu0 %v1763
        %v1856 = vpop.f32.mrb[0].mxu0
        %v1857 = vadd.f32 0.0, %v1856
        %v1858 = vpop.f32.mrb[0].mxu0
        %v1859 = vpop.f32.mrb[0].mxu0
        %v1860 = vadd.f32 0.0, %v1859
        %v1861 = vpop.f32.mrb[0].mxu0
        %1862 = vmatprep.mubr.bf16.mxu0 0
        %1863 = vmatmul.mubr.bf16.gmra.mrb[0].mxu0 %v1766
        %v1864 = vpop.f32.mrb[0].mxu0
        %v1865 = vadd.f32 0.0, %v1864
        %v1866 = vpop.f32.mrb[0].mxu0
        %v1867 = vpop.f32.mrb[0].mxu0
        %v1868 = vadd.f32 0.0, %v1867
        %v1869 = vpop.f32.mrb[0].mxu0
        %1870 = vmatprep.mubr.bf16.mxu0 0
        %1871 = vmatmul.mubr.bf16.gmra.mrb[0].mxu0 %v1769
        %v1872 = vpop.f32.mrb[0].mxu0
        %v1873 = vadd.f32 0.0, %v1872
        %v1874 = vpop.f32.mrb[0].mxu0
        %v1875 = vpop.f32.mrb[0].mxu0
        %v1876 = vadd.f32 0.0, %v1875
        %v1877 = vpop.f32.mrb[0].mxu0
        %1878 = vmatprep.mubr.bf16.mxu0 0
        %1879 = vmatmul.mubr.bf16.gmra.mrb[0].mxu0 %v1772
        %v1880 = vpop.f32.mrb[0].mxu0
        %v1881 = vadd.f32 0.0, %v1880
        %v1882 = vpop.f32.mrb[0].mxu0
        %v1883 = vpop.f32.mrb[0].mxu0
        %v1884 = vadd.f32 0.0, %v1883
        %v1885 = vpop.f32.mrb[0].mxu0
        %1886 = vmatprep.mubr.bf16.mxu0 0
        %1887 = vmatmul.mubr.bf16.gmra.mrb[0].mxu0 %v1775
        %v1888 = vpop.f32.mrb[0].mxu0
        %v1889 = vadd.f32 0.0, %v1888
        %v1890 = vpop.f32.mrb[0].mxu0
        %v1891 = vpop.f32.mrb[0].mxu0
        %v1892 = vadd.f32 0.0, %v1891
        %v1893 = vpop.f32.mrb[0].mxu0
        %1894 = vmatprep.mubr.bf16.mxu0 0
        %1895 = vmatmul.mubr.bf16.gmra.mrb[0].mxu0 %v1778
        %v1896 = vpop.f32.mrb[0].mxu0
        %v1897 = vadd.f32 0.0, %v1896
        %v1898 = vpop.f32.mrb[0].mxu0
        %v1899 = vpop.f32.mrb[0].mxu0
        %v1900 = vadd.f32 0.0, %v1899
        %v1901 = vpop.f32.mrb[0].mxu0
        %1902 = vmatprep.mubr.bf16.mxu0 0
        %1903 = vmatmul.mubr.bf16.gmra.mrb[0].mxu0 %v1781
        %v1904 = vpop.f32.mrb[0].mxu0
        %v1905 = vadd.f32 0.0, %v1904
        %v1906 = vpop.f32.mrb[0].mxu0
        %v1907 = vpop.f32.mrb[0].mxu0
        %v1908 = vadd.f32 0.0, %v1907
        %v1909 = vpop.f32.mrb[0].mxu0
        %1910 = vmatprep.mubr.bf16.mxu0 0
        %1911 = vmatmul.mubr.bf16.gmra.mrb[0].mxu0 %v1784
        %v1912 = vpop.f32.mrb[0].mxu0
        %v1913 = vadd.f32 0.0, %v1912
        %v1914 = vpop.f32.mrb[0].mxu0
        %v1915 = vpop.f32.mrb[0].mxu0
        %v1916 = vadd.f32 0.0, %v1915
        %v1917 = vpop.f32.mrb[0].mxu0
        %1918 = vmatprep.mubr.bf16.mxu0 0
        %1919 = vmatmul.mubr.bf16.gmra.mrb[0].mxu0 %v1787
        %v1920 = vpop.f32.mrb[0].mxu0
        %v1921 = vadd.f32 0.0, %v1920
        %v1922 = vpop.f32.mrb[0].mxu0
        %v1923 = vpop.f32.mrb[0].mxu0
        %v1924 = vadd.f32 0.0, %v1923
        %v1925 = vpop.f32.mrb[0].mxu0
        %1926 = vmatprep.mubr.bf16.mxu0 0
        %1927 = vmatmul.mubr.bf16.gmra.mrb[0].mxu0 %v1790
        %v1928 = vpop.f32.mrb[0].mxu0
        %v1929 = vadd.f32 0.0, %v1928
        %v1930 = vpop.f32.mrb[0].mxu0
        %v1931 = vpop.f32.mrb[0].mxu0
        %v1932 = vadd.f32 0.0, %v1931
        %v1933 = vpop.f32.mrb[0].mxu0
        %1934 = vmatprep.mubr.bf16.mxu0 0
        %1935 = vmatmul.mubr.bf16.gmra.mrb[0].mxu0 %v1793
        %v1936 = vpop.f32.mrb[0].mxu0
        %v1937 = vadd.f32 0.0, %v1936
        %v1938 = vpop.f32.mrb[0].mxu0
        %v1939 = vpop.f32.mrb[0].mxu0
        %v1940 = vadd.f32 0.0, %v1939
        %v1941 = vpop.f32.mrb[0].mxu0
        %1942 = vdwg.mxu0
        %v1943 = vadd.f32 %v1694, %v1833
        %v1944 = vadd.f32 %v1695, %v1836
        %v1945 = vadd.f32 %v1696, %v1841
        %v1946 = vadd.f32 %v1697, %v1844
        %v1947 = vadd.f32 %v1698, %v1849
        %v1948 = vadd.f32 %v1699, %v1852
        %v1949 = vadd.f32 %v1700, %v1857
        %v1950 = vadd.f32 %v1701, %v1860
        %v1951 = vadd.f32 %v1702, %v1865
        %v1952 = vadd.f32 %v1703, %v1868
        %v1953 = vadd.f32 %v1704, %v1873
        %v1954 = vadd.f32 %v1705, %v1876
        %v1955 = vadd.f32 %v1706, %v1881
        %v1956 = vadd.f32 %v1707, %v1884
        %v1957 = vadd.f32 %v1708, %v1889
        %v1958 = vadd.f32 %v1709, %v1892
        %v1959 = vadd.f32 %v1710, %v1897
        %v1960 = vadd.f32 %v1711, %v1900
        %v1961 = vadd.f32 %v1712, %v1905
        %v1962 = vadd.f32 %v1713, %v1908
        %v1963 = vadd.f32 %v1714, %v1913
        %v1964 = vadd.f32 %v1715, %v1916
        %v1965 = vadd.f32 %v1716, %v1921
        %v1966 = vadd.f32 %v1717, %v1924
        %v1967 = vadd.f32 %v1718, %v1929
        %v1968 = vadd.f32 %v1719, %v1932
        %v1969 = vadd.f32 %v1720, %v1937
        %v1970 = vadd.f32 %v1721, %v1940
        %v1971 = vld [vmem:[%s169 + $0x10] sm:$0xf]
        %v1972 = vld [vmem:[%s169 + $0x14] sm:$0xf]
        %v1973 = vld [vmem:[%s169 + $0x18] sm:$0xf]
        %v1974 = vld [vmem:[%s169 + $0x1c] sm:$0xf]
        %v1975 = vld [vmem:[%s169 + $0x20] sm:$0xf]
        %v1976 = vld [vmem:[%s169 + $0x24] sm:$0xf]
        %v1977 = vld [vmem:[%s169 + $0x28] sm:$0xf]
        %v1978 = vld [vmem:[%s169 + $0x2c] sm:$0xf]
        %v1979 = vld [vmem:[%s169 + $0x30] sm:$0xf]
        %v1980 = vld [vmem:[%s169 + $0x34] sm:$0xf]
        %v1981 = vld [vmem:[%s169 + $0x38] sm:$0xf]
        %v1982 = vld [vmem:[%s169 + $0x3c] sm:$0xf]
        %v1983 = vld [vmem:[%s169 + $0x40] sm:$0xf]
        %v1984 = vld [vmem:[%s169 + $0x44] sm:$0xf]
        %v1985 = vld [vmem:[%s169 + $0x48] sm:$0xf]
        %v1986 = vld [vmem:[%s169 + $0x4c] sm:$0xf]
        %v1987 = vld [vmem:[%s169 + $0x50] sm:$0xf]
        %v1988 = vld [vmem:[%s169 + $0x54] sm:$0xf]
        %v1989 = vld [vmem:[%s169 + $0x58] sm:$0xf]
        %v1990 = vld [vmem:[%s169 + $0x5c] sm:$0xf]
        %v1991 = vld [vmem:[%s169 + $0x60] sm:$0xf]
        %v1992 = vld [vmem:[%s169 + $0x64] sm:$0xf]
        %v1993 = vld [vmem:[%s169 + $0x68] sm:$0xf]
        %v1994 = vld [vmem:[%s169 + $0x6c] sm:$0xf]
        %v1995 = vld [vmem:[%s169 + $0x70] sm:$0xf]
        %v1996 = vld [vmem:[%s169 + $0x74] sm:$0xf]
        %v1997 = vld [vmem:[%s169 + $0x78] sm:$0xf]
        %v1998 = vld [vmem:[%s169 + $0x7c] sm:$0x7]
        %v2027 = vunpack.c.l.b16 %v1971
        %v2028 = vunpack.c.l.b16 %v1972
        %v2029 = vunpack.c.l.b16 %v1973
        %v2030 = vunpack.c.l.b16 %v1974
        %v2031 = vunpack.c.l.b16 %v1975
        %v2032 = vunpack.c.l.b16 %v1976
        %v2033 = vunpack.c.l.b16 %v1977
        %v2034 = vunpack.c.l.b16 %v1978
        %v2035 = vunpack.c.l.b16 %v1979
        %v2036 = vunpack.c.l.b16 %v1980
        %v2037 = vunpack.c.l.b16 %v1981
        %v2038 = vunpack.c.l.b16 %v1982
        %v2039 = vunpack.c.l.b16 %v1983
        %v2040 = vunpack.c.l.b16 %v1984
        %v2041 = vunpack.c.l.b16 %v1985
        %v2042 = vunpack.c.l.b16 %v1986
        %v2043 = vunpack.c.l.b16 %v1987
        %v2044 = vunpack.c.l.b16 %v1988
        %v2045 = vunpack.c.l.b16 %v1989
        %v2046 = vunpack.c.l.b16 %v1990
        %v2047 = vunpack.c.l.b16 %v1991
        %v2048 = vunpack.c.l.b16 %v1992
        %v2049 = vunpack.c.l.b16 %v1993
        %v2050 = vunpack.c.l.b16 %v1994
        %v2051 = vunpack.c.l.b16 %v1995
        %v2052 = vunpack.c.l.b16 %v1996
        %v2053 = vunpack.c.l.b16 %v1997
        %v2054 = vunpack.c.l.b16 %v1998
        %v2055 = vpack.c.b16 %v2028, %v2027
        %v2056 = vpack.c.b16 %v2030, %v2029
        %v2057 = vpack.c.b16 %v2032, %v2031
        %v2058 = vpack.c.b16 %v2034, %v2033
        %v2059 = vpack.c.b16 %v2036, %v2035
        %v2060 = vpack.c.b16 %v2038, %v2037
        %v2061 = vpack.c.b16 %v2040, %v2039
        %v2062 = vpack.c.b16 %v2042, %v2041
        %v2063 = vpack.c.b16 %v2044, %v2043
        %v2064 = vpack.c.b16 %v2046, %v2045
        %v2065 = vpack.c.b16 %v2048, %v2047
        %v2066 = vpack.c.b16 %v2050, %v2049
        %v2067 = vpack.c.b16 %v2052, %v2051
        %v2068 = vpack.c.b16 %v2054, %v2053
        %v2070 = vsel %vm295, %v2055, 0
        %v2073 = vsel %vm295, %v2056, 0
        %v2076 = vsel %vm295, %v2057, 0
        %v2079 = vsel %vm295, %v2058, 0
        %v2082 = vsel %vm295, %v2059, 0
        %v2085 = vsel %vm295, %v2060, 0
        %v2088 = vsel %vm295, %v2061, 0
        %v2091 = vsel %vm295, %v2062, 0
        %v2094 = vsel %vm295, %v2063, 0
        %v2097 = vsel %vm295, %v2064, 0
        %v2100 = vsel %vm295, %v2065, 0
        %v2103 = vsel %vm295, %v2066, 0
        %v2106 = vsel %vm295, %v2067, 0
        %v2109 = vsel %vm295, %v2068, 0
        %v2112 = vsel %vm338, %v186, 0
        %2114 = vmatprep.subr.bf16.mxu0 0
        %2115 = vmatpush1.bf16.msra.mxu0 %v2112
        %2116 = vmatprep.subr.bf16.mxu0 0
        %2117 = vmatpush1.bf16.msra.mxu0 0
        %2118 = vmatprep.subr.bf16.mxu0 0
        %2119 = vmatpush1.bf16.msra.mxu0 0
        %2120 = vmatprep.subr.bf16.mxu0 0
        %2121 = vmatpush1.bf16.msra.mxu0 0
        %2122 = vmatprep.subr.bf16.mxu0 0
        %2123 = vmatpush1.bf16.msra.mxu0 0
        %2124 = vmatprep.subr.bf16.mxu0 0
        %2125 = vmatpush1.bf16.msra.mxu0 0
        %2126 = vmatprep.subr.bf16.mxu0 0
        %2127 = vmatpush1.bf16.msra.mxu0 0
        %2128 = vmatprep.subr.bf16.mxu0 0
        %2129 = vmatpush1.bf16.msra.mxu0 0
        %2130 = vmatprep.subr.bf16.mxu0 0
        %2131 = vmatpush1.bf16.msra.mxu0 0
        %2132 = vmatprep.subr.bf16.mxu0 0
        %2133 = vmatpush1.bf16.msra.mxu0 0
        %2134 = vmatprep.subr.bf16.mxu0 0
        %2135 = vmatpush1.bf16.msra.mxu0 0
        %2136 = vmatprep.subr.bf16.mxu0 0
        %2137 = vmatpush1.bf16.msra.mxu0 0
        %2138 = vmatprep.subr.bf16.mxu0 0
        %2139 = vmatpush1.bf16.msra.mxu0 0
        %2140 = vmatprep.subr.bf16.mxu0 0
        %2141 = vmatpush1.bf16.msra.mxu0 0
        %2142 = vmatprep.subr.bf16.mxu0 0
        %2143 = vmatpush1.bf16.msra.mxu0 0
        %2144 = vmatprep.subr.bf16.mxu0 0
        %2145 = vmatpush1.bf16.msra.mxu0 0
        %2146 = vmatprep.mubr.bf16.mxu0 0
        %2147 = vmatmul.mubr.bf16.gmra.mrb[0].mxu0 %v2070
        %v2148 = vpop.f32.mrb[0].mxu0
        %v2149 = vadd.f32 0.0, %v2148
        %v2150 = vpop.f32.mrb[0].mxu0
        %v2151 = vpop.f32.mrb[0].mxu0
        %v2152 = vadd.f32 0.0, %v2151
        %v2153 = vpop.f32.mrb[0].mxu0
        %2154 = vmatprep.mubr.bf16.mxu0 0
        %2155 = vmatmul.mubr.bf16.gmra.mrb[0].mxu0 %v2073
        %v2156 = vpop.f32.mrb[0].mxu0
        %v2157 = vadd.f32 0.0, %v2156
        %v2158 = vpop.f32.mrb[0].mxu0
        %v2159 = vpop.f32.mrb[0].mxu0
        %v2160 = vadd.f32 0.0, %v2159
        %v2161 = vpop.f32.mrb[0].mxu0
        %2162 = vmatprep.mubr.bf16.mxu0 0
        %2163 = vmatmul.mubr.bf16.gmra.mrb[0].mxu0 %v2076
        %v2164 = vpop.f32.mrb[0].mxu0
        %v2165 = vadd.f32 0.0, %v2164
        %v2166 = vpop.f32.mrb[0].mxu0
        %v2167 = vpop.f32.mrb[0].mxu0
        %v2168 = vadd.f32 0.0, %v2167
        %v2169 = vpop.f32.mrb[0].mxu0
        %2170 = vmatprep.mubr.bf16.mxu0 0
        %2171 = vmatmul.mubr.bf16.gmra.mrb[0].mxu0 %v2079
        %v2172 = vpop.f32.mrb[0].mxu0
        %v2173 = vadd.f32 0.0, %v2172
        %v2174 = vpop.f32.mrb[0].mxu0
        %v2175 = vpop.f32.mrb[0].mxu0
        %v2176 = vadd.f32 0.0, %v2175
        %v2177 = vpop.f32.mrb[0].mxu0
        %2178 = vmatprep.mubr.bf16.mxu0 0
        %2179 = vmatmul.mubr.bf16.gmra.mrb[0].mxu0 %v2082
        %v2180 = vpop.f32.mrb[0].mxu0
        %v2181 = vadd.f32 0.0, %v2180
        %v2182 = vpop.f32.mrb[0].mxu0
        %v2183 = vpop.f32.mrb[0].mxu0
        %v2184 = vadd.f32 0.0, %v2183
        %v2185 = vpop.f32.mrb[0].mxu0
        %2186 = vmatprep.mubr.bf16.mxu0 0
        %2187 = vmatmul.mubr.bf16.gmra.mrb[0].mxu0 %v2085
        %v2188 = vpop.f32.mrb[0].mxu0
        %v2189 = vadd.f32 0.0, %v2188
        %v2190 = vpop.f32.mrb[0].mxu0
        %v2191 = vpop.f32.mrb[0].mxu0
        %v2192 = vadd.f32 0.0, %v2191
        %v2193 = vpop.f32.mrb[0].mxu0
        %2194 = vmatprep.mubr.bf16.mxu0 0
        %2195 = vmatmul.mubr.bf16.gmra.mrb[0].mxu0 %v2088
        %v2196 = vpop.f32.mrb[0].mxu0
        %v2197 = vadd.f32 0.0, %v2196
        %v2198 = vpop.f32.mrb[0].mxu0
        %v2199 = vpop.f32.mrb[0].mxu0
        %v2200 = vadd.f32 0.0, %v2199
        %v2201 = vpop.f32.mrb[0].mxu0
        %2202 = vmatprep.mubr.bf16.mxu0 0
        %2203 = vmatmul.mubr.bf16.gmra.mrb[0].mxu0 %v2091
        %v2204 = vpop.f32.mrb[0].mxu0
        %v2205 = vadd.f32 0.0, %v2204
        %v2206 = vpop.f32.mrb[0].mxu0
        %v2207 = vpop.f32.mrb[0].mxu0
        %v2208 = vadd.f32 0.0, %v2207
        %v2209 = vpop.f32.mrb[0].mxu0
        %2210 = vmatprep.mubr.bf16.mxu0 0
        %2211 = vmatmul.mubr.bf16.gmra.mrb[0].mxu0 %v2094
        %v2212 = vpop.f32.mrb[0].mxu0
        %v2213 = vadd.f32 0.0, %v2212
        %v2214 = vpop.f32.mrb[0].mxu0
        %v2215 = vpop.f32.mrb[0].mxu0
        %v2216 = vadd.f32 0.0, %v2215
        %v2217 = vpop.f32.mrb[0].mxu0
        %2218 = vmatprep.mubr.bf16.mxu0 0
        %2219 = vmatmul.mubr.bf16.gmra.mrb[0].mxu0 %v2097
        %v2220 = vpop.f32.mrb[0].mxu0
        %v2221 = vadd.f32 0.0, %v2220
        %v2222 = vpop.f32.mrb[0].mxu0
        %v2223 = vpop.f32.mrb[0].mxu0
        %v2224 = vadd.f32 0.0, %v2223
        %v2225 = vpop.f32.mrb[0].mxu0
        %2226 = vmatprep.mubr.bf16.mxu0 0
        %2227 = vmatmul.mubr.bf16.gmra.mrb[0].mxu0 %v2100
        %v2228 = vpop.f32.mrb[0].mxu0
        %v2229 = vadd.f32 0.0, %v2228
        %v2230 = vpop.f32.mrb[0].mxu0
        %v2231 = vpop.f32.mrb[0].mxu0
        %v2232 = vadd.f32 0.0, %v2231
        %v2233 = vpop.f32.mrb[0].mxu0
        %2234 = vmatprep.mubr.bf16.mxu0 0
        %2235 = vmatmul.mubr.bf16.gmra.mrb[0].mxu0 %v2103
        %v2236 = vpop.f32.mrb[0].mxu0
        %v2237 = vadd.f32 0.0, %v2236
        %v2238 = vpop.f32.mrb[0].mxu0
        %v2239 = vpop.f32.mrb[0].mxu0
        %v2240 = vadd.f32 0.0, %v2239
        %v2241 = vpop.f32.mrb[0].mxu0
        %2242 = vmatprep.mubr.bf16.mxu0 0
        %2243 = vmatmul.mubr.bf16.gmra.mrb[0].mxu0 %v2106
        %v2244 = vpop.f32.mrb[0].mxu0
        %v2245 = vadd.f32 0.0, %v2244
        %v2246 = vpop.f32.mrb[0].mxu0
        %v2247 = vpop.f32.mrb[0].mxu0
        %v2248 = vadd.f32 0.0, %v2247
        %v2249 = vpop.f32.mrb[0].mxu0
        %2250 = vmatprep.mubr.bf16.mxu0 0
        %2251 = vmatmul.mubr.bf16.gmra.mrb[0].mxu0 %v2109
        %v2252 = vpop.f32.mrb[0].mxu0
        %v2253 = vadd.f32 0.0, %v2252
        %v2254 = vpop.f32.mrb[0].mxu0
        %v2255 = vpop.f32.mrb[0].mxu0
        %v2256 = vadd.f32 0.0, %v2255
        %v2257 = vpop.f32.mrb[0].mxu0
        %2258 = vdwg.mxu0
        %v2259 = vadd.f32 %v1943, %v2149
        %v2260 = vadd.f32 %v1944, %v2152
        %v2261 = vadd.f32 %v1945, %v2157
        %v2262 = vadd.f32 %v1946, %v2160
        %v2263 = vadd.f32 %v1947, %v2165
        %v2264 = vadd.f32 %v1948, %v2168
        %v2265 = vadd.f32 %v1949, %v2173
        %v2266 = vadd.f32 %v1950, %v2176
        %v2267 = vadd.f32 %v1951, %v2181
        %v2268 = vadd.f32 %v1952, %v2184
        %v2269 = vadd.f32 %v1953, %v2189
        %v2270 = vadd.f32 %v1954, %v2192
        %v2271 = vadd.f32 %v1955, %v2197
        %v2272 = vadd.f32 %v1956, %v2200
        %v2273 = vadd.f32 %v1957, %v2205
        %v2274 = vadd.f32 %v1958, %v2208
        %v2275 = vadd.f32 %v1959, %v2213
        %v2276 = vadd.f32 %v1960, %v2216
        %v2277 = vadd.f32 %v1961, %v2221
        %v2278 = vadd.f32 %v1962, %v2224
        %v2279 = vadd.f32 %v1963, %v2229
        %v2280 = vadd.f32 %v1964, %v2232
        %v2281 = vadd.f32 %v1965, %v2237
        %v2282 = vadd.f32 %v1966, %v2240
        %v2283 = vadd.f32 %v1967, %v2245
        %v2284 = vadd.f32 %v1968, %v2248
        %v2285 = vadd.f32 %v1969, %v2253
        %v2286 = vadd.f32 %v1970, %v2256
        %v2287 = vld [vmem:[%s169 + $0x7c] sm:$0xf]
        %v2289 = vunpack.c.l.b16 %v2287
        %v2290 = vpack.c.b16 %v2289, %v2053
        %v2291 = vshrl.u32 %v2055, 16
        %v2293 = vshll.u32 %v2055, 16
        %v2295 = vrot.slane %v2293, 1
        %v2296 = vor.u32 %v2291, %v2295
        %v2297 = vshll.u32 %v2056, 16
        %v2299 = vrot.slane %v2297, 1
        %v2300 = vsel %vm519, %v2296, %v2299
        %v2301 = vshrl.u32 %v2056, 16
        %v2303 = vor.u32 %v2301, %v2299
        %v2304 = vshll.u32 %v2057, 16
        %v2306 = vrot.slane %v2304, 1
        %v2307 = vsel %vm519, %v2303, %v2306
        %v2308 = vshrl.u32 %v2057, 16
        %v2310 = vor.u32 %v2308, %v2306
        %v2311 = vshll.u32 %v2058, 16
        %v2313 = vrot.slane %v2311, 1
        %v2314 = vsel %vm519, %v2310, %v2313
        %v2315 = vshrl.u32 %v2058, 16
        %v2317 = vor.u32 %v2315, %v2313
        %v2318 = vshll.u32 %v2059, 16
        %v2320 = vrot.slane %v2318, 1
        %v2321 = vsel %vm519, %v2317, %v2320
        %v2322 = vshrl.u32 %v2059, 16
        %v2324 = vor.u32 %v2322, %v2320
        %v2325 = vshll.u32 %v2060, 16
        %v2327 = vrot.slane %v2325, 1
        %v2328 = vsel %vm519, %v2324, %v2327
        %v2329 = vshrl.u32 %v2060, 16
        %v2331 = vor.u32 %v2329, %v2327
        %v2332 = vshll.u32 %v2061, 16
        %v2334 = vrot.slane %v2332, 1
        %v2335 = vsel %vm519, %v2331, %v2334
        %v2336 = vshrl.u32 %v2061, 16
        %v2338 = vor.u32 %v2336, %v2334
        %v2339 = vshll.u32 %v2062, 16
        %v2341 = vrot.slane %v2339, 1
        %v2342 = vsel %vm519, %v2338, %v2341
        %v2343 = vshrl.u32 %v2062, 16
        %v2345 = vor.u32 %v2343, %v2341
        %v2346 = vshll.u32 %v2063, 16
        %v2348 = vrot.slane %v2346, 1
        %v2349 = vsel %vm519, %v2345, %v2348
        %v2350 = vshrl.u32 %v2063, 16
        %v2352 = vor.u32 %v2350, %v2348
        %v2353 = vshll.u32 %v2064, 16
        %v2355 = vrot.slane %v2353, 1
        %v2356 = vsel %vm519, %v2352, %v2355
        %v2357 = vshrl.u32 %v2064, 16
        %v2359 = vor.u32 %v2357, %v2355
        %v2360 = vshll.u32 %v2065, 16
        %v2362 = vrot.slane %v2360, 1
        %v2363 = vsel %vm519, %v2359, %v2362
        %v2364 = vshrl.u32 %v2065, 16
        %v2366 = vor.u32 %v2364, %v2362
        %v2367 = vshll.u32 %v2066, 16
        %v2369 = vrot.slane %v2367, 1
        %v2370 = vsel %vm519, %v2366, %v2369
        %v2371 = vshrl.u32 %v2066, 16
        %v2373 = vor.u32 %v2371, %v2369
        %v2374 = vshll.u32 %v2067, 16
        %v2376 = vrot.slane %v2374, 1
        %v2377 = vsel %vm519, %v2373, %v2376
        %v2378 = vshrl.u32 %v2067, 16
        %v2380 = vor.u32 %v2378, %v2376
        %v2382 = vshll.u32 %v2290, 16
        %v2384 = vrot.slane %v2382, 1
        %v2385 = vsel %vm519, %v2380, %v2384
        %v2386 = vshrl.u32 %v2290, 16
        %v2388 = vor.u32 %v2386, %v2384
        %v2390 = vsel %vm295, %v2300, 0
        %v2393 = vsel %vm295, %v2307, 0
        %v2396 = vsel %vm295, %v2314, 0
        %v2399 = vsel %vm295, %v2321, 0
        %v2402 = vsel %vm295, %v2328, 0
        %v2405 = vsel %vm295, %v2335, 0
        %v2408 = vsel %vm295, %v2342, 0
        %v2411 = vsel %vm295, %v2349, 0
        %v2414 = vsel %vm295, %v2356, 0
        %v2417 = vsel %vm295, %v2363, 0
        %v2420 = vsel %vm295, %v2370, 0
        %v2423 = vsel %vm295, %v2377, 0
        %v2426 = vsel %vm295, %v2385, 0
        %v2429 = vsel %vm295, %v2388, 0
        %v2432 = vsel %vm338, %v188, 0
        %2434 = vmatprep.subr.bf16.mxu0 0
        %2435 = vmatpush1.bf16.msra.mxu0 %v2432
        %2436 = vmatprep.subr.bf16.mxu0 0
        %2437 = vmatpush1.bf16.msra.mxu0 0
        %2438 = vmatprep.subr.bf16.mxu0 0
        %2439 = vmatpush1.bf16.msra.mxu0 0
        %2440 = vmatprep.subr.bf16.mxu0 0
        %2441 = vmatpush1.bf16.msra.mxu0 0
        %2442 = vmatprep.subr.bf16.mxu0 0
        %2443 = vmatpush1.bf16.msra.mxu0 0
        %2444 = vmatprep.subr.bf16.mxu0 0
        %2445 = vmatpush1.bf16.msra.mxu0 0
        %2446 = vmatprep.subr.bf16.mxu0 0
        %2447 = vmatpush1.bf16.msra.mxu0 0
        %2448 = vmatprep.subr.bf16.mxu0 0
        %2449 = vmatpush1.bf16.msra.mxu0 0
        %2450 = vmatprep.subr.bf16.mxu0 0
        %2451 = vmatpush1.bf16.msra.mxu0 0
        %2452 = vmatprep.subr.bf16.mxu0 0
        %2453 = vmatpush1.bf16.msra.mxu0 0
        %2454 = vmatprep.subr.bf16.mxu0 0
        %2455 = vmatpush1.bf16.msra.mxu0 0
        %2456 = vmatprep.subr.bf16.mxu0 0
        %2457 = vmatpush1.bf16.msra.mxu0 0
        %2458 = vmatprep.subr.bf16.mxu0 0
        %2459 = vmatpush1.bf16.msra.mxu0 0
        %2460 = vmatprep.subr.bf16.mxu0 0
        %2461 = vmatpush1.bf16.msra.mxu0 0
        %2462 = vmatprep.subr.bf16.mxu0 0
        %2463 = vmatpush1.bf16.msra.mxu0 0
        %2464 = vmatprep.subr.bf16.mxu0 0
        %2465 = vmatpush1.bf16.msra.mxu0 0
        %2466 = vmatprep.mubr.bf16.mxu0 0
        %2467 = vmatmul.mubr.bf16.gmra.mrb[0].mxu0 %v2390
        %v2468 = vpop.f32.mrb[0].mxu0
        %v2469 = vadd.f32 0.0, %v2468
        %v2470 = vpop.f32.mrb[0].mxu0
        %v2471 = vpop.f32.mrb[0].mxu0
        %v2472 = vadd.f32 0.0, %v2471
        %v2473 = vpop.f32.mrb[0].mxu0
        %2474 = vmatprep.mubr.bf16.mxu0 0
        %2475 = vmatmul.mubr.bf16.gmra.mrb[0].mxu0 %v2393
        %v2476 = vpop.f32.mrb[0].mxu0
        %v2477 = vadd.f32 0.0, %v2476
        %v2478 = vpop.f32.mrb[0].mxu0
        %v2479 = vpop.f32.mrb[0].mxu0
        %v2480 = vadd.f32 0.0, %v2479
        %v2481 = vpop.f32.mrb[0].mxu0
        %2482 = vmatprep.mubr.bf16.mxu0 0
        %2483 = vmatmul.mubr.bf16.gmra.mrb[0].mxu0 %v2396
        %v2484 = vpop.f32.mrb[0].mxu0
        %v2485 = vadd.f32 0.0, %v2484
        %v2486 = vpop.f32.mrb[0].mxu0
        %v2487 = vpop.f32.mrb[0].mxu0
        %v2488 = vadd.f32 0.0, %v2487
        %v2489 = vpop.f32.mrb[0].mxu0
        %2490 = vmatprep.mubr.bf16.mxu0 0
        %2491 = vmatmul.mubr.bf16.gmra.mrb[0].mxu0 %v2399
        %v2492 = vpop.f32.mrb[0].mxu0
        %v2493 = vadd.f32 0.0, %v2492
        %v2494 = vpop.f32.mrb[0].mxu0
        %v2495 = vpop.f32.mrb[0].mxu0
        %v2496 = vadd.f32 0.0, %v2495
        %v2497 = vpop.f32.mrb[0].mxu0
        %2498 = vmatprep.mubr.bf16.mxu0 0
        %2499 = vmatmul.mubr.bf16.gmra.mrb[0].mxu0 %v2402
        %v2500 = vpop.f32.mrb[0].mxu0
        %v2501 = vadd.f32 0.0, %v2500
        %v2502 = vpop.f32.mrb[0].mxu0
        %v2503 = vpop.f32.mrb[0].mxu0
        %v2504 = vadd.f32 0.0, %v2503
        %v2505 = vpop.f32.mrb[0].mxu0
        %2506 = vmatprep.mubr.bf16.mxu0 0
        %2507 = vmatmul.mubr.bf16.gmra.mrb[0].mxu0 %v2405
        %v2508 = vpop.f32.mrb[0].mxu0
        %v2509 = vadd.f32 0.0, %v2508
        %v2510 = vpop.f32.mrb[0].mxu0
        %v2511 = vpop.f32.mrb[0].mxu0
        %v2512 = vadd.f32 0.0, %v2511
        %v2513 = vpop.f32.mrb[0].mxu0
        %2514 = vmatprep.mubr.bf16.mxu0 0
        %2515 = vmatmul.mubr.bf16.gmra.mrb[0].mxu0 %v2408
        %v2516 = vpop.f32.mrb[0].mxu0
        %v2517 = vadd.f32 0.0, %v2516
        %v2518 = vpop.f32.mrb[0].mxu0
        %v2519 = vpop.f32.mrb[0].mxu0
        %v2520 = vadd.f32 0.0, %v2519
        %v2521 = vpop.f32.mrb[0].mxu0
        %2522 = vmatprep.mubr.bf16.mxu0 0
        %2523 = vmatmul.mubr.bf16.gmra.mrb[0].mxu0 %v2411
        %v2524 = vpop.f32.mrb[0].mxu0
        %v2525 = vadd.f32 0.0, %v2524
        %v2526 = vpop.f32.mrb[0].mxu0
        %v2527 = vpop.f32.mrb[0].mxu0
        %v2528 = vadd.f32 0.0, %v2527
        %v2529 = vpop.f32.mrb[0].mxu0
        %2530 = vmatprep.mubr.bf16.mxu0 0
        %2531 = vmatmul.mubr.bf16.gmra.mrb[0].mxu0 %v2414
        %v2532 = vpop.f32.mrb[0].mxu0
        %v2533 = vadd.f32 0.0, %v2532
        %v2534 = vpop.f32.mrb[0].mxu0
        %v2535 = vpop.f32.mrb[0].mxu0
        %v2536 = vadd.f32 0.0, %v2535
        %v2537 = vpop.f32.mrb[0].mxu0
        %2538 = vmatprep.mubr.bf16.mxu0 0
        %2539 = vmatmul.mubr.bf16.gmra.mrb[0].mxu0 %v2417
        %v2540 = vpop.f32.mrb[0].mxu0
        %v2541 = vadd.f32 0.0, %v2540
        %v2542 = vpop.f32.mrb[0].mxu0
        %v2543 = vpop.f32.mrb[0].mxu0
        %v2544 = vadd.f32 0.0, %v2543
        %v2545 = vpop.f32.mrb[0].mxu0
        %2546 = vmatprep.mubr.bf16.mxu0 0
        %2547 = vmatmul.mubr.bf16.gmra.mrb[0].mxu0 %v2420
        %v2548 = vpop.f32.mrb[0].mxu0
        %v2549 = vadd.f32 0.0, %v2548
        %v2550 = vpop.f32.mrb[0].mxu0
        %v2551 = vpop.f32.mrb[0].mxu0
        %v2552 = vadd.f32 0.0, %v2551
        %v2553 = vpop.f32.mrb[0].mxu0
        %2554 = vmatprep.mubr.bf16.mxu0 0
        %2555 = vmatmul.mubr.bf16.gmra.mrb[0].mxu0 %v2423
        %v2556 = vpop.f32.mrb[0].mxu0
        %v2557 = vadd.f32 0.0, %v2556
        %v2558 = vpop.f32.mrb[0].mxu0
        %v2559 = vpop.f32.mrb[0].mxu0
        %v2560 = vadd.f32 0.0, %v2559
        %v2561 = vpop.f32.mrb[0].mxu0
        %2562 = vmatprep.mubr.bf16.mxu0 0
        %2563 = vmatmul.mubr.bf16.gmra.mrb[0].mxu0 %v2426
        %v2564 = vpop.f32.mrb[0].mxu0
        %v2565 = vadd.f32 0.0, %v2564
        %v2566 = vpop.f32.mrb[0].mxu0
        %v2567 = vpop.f32.mrb[0].mxu0
        %v2568 = vadd.f32 0.0, %v2567
        %v2569 = vpop.f32.mrb[0].mxu0
        %2570 = vmatprep.mubr.bf16.mxu0 0
        %2571 = vmatmul.mubr.bf16.gmra.mrb[0].mxu0 %v2429
        %v2572 = vpop.f32.mrb[0].mxu0
        %v2573 = vadd.f32 0.0, %v2572
        %v2574 = vpop.f32.mrb[0].mxu0
        %v2575 = vpop.f32.mrb[0].mxu0
        %v2576 = vadd.f32 0.0, %v2575
        %v2577 = vpop.f32.mrb[0].mxu0
        %2578 = vdwg.mxu0
        %v2579 = vadd.f32 %v2259, %v2469
        %v2580 = vadd.f32 %v2260, %v2472
        %v2581 = vadd.f32 %v2261, %v2477
        %v2582 = vadd.f32 %v2262, %v2480
        %v2583 = vadd.f32 %v2263, %v2485
        %v2584 = vadd.f32 %v2264, %v2488
        %v2585 = vadd.f32 %v2265, %v2493
        %v2586 = vadd.f32 %v2266, %v2496
        %v2587 = vadd.f32 %v2267, %v2501
        %v2588 = vadd.f32 %v2268, %v2504
        %v2589 = vadd.f32 %v2269, %v2509
        %v2590 = vadd.f32 %v2270, %v2512
        %v2591 = vadd.f32 %v2271, %v2517
        %v2592 = vadd.f32 %v2272, %v2520
        %v2593 = vadd.f32 %v2273, %v2525
        %v2594 = vadd.f32 %v2274, %v2528
        %v2595 = vadd.f32 %v2275, %v2533
        %v2596 = vadd.f32 %v2276, %v2536
        %v2597 = vadd.f32 %v2277, %v2541
        %v2598 = vadd.f32 %v2278, %v2544
        %v2599 = vadd.f32 %v2279, %v2549
        %v2600 = vadd.f32 %v2280, %v2552
        %v2601 = vadd.f32 %v2281, %v2557
        %v2602 = vadd.f32 %v2282, %v2560
        %v2603 = vadd.f32 %v2283, %v2565
        %v2604 = vadd.f32 %v2284, %v2568
        %v2605 = vadd.f32 %v2285, %v2573
        %v2606 = vadd.f32 %v2286, %v2576
        %v2607 = vld [vmem:[%s169 + $0x10] sm:$0xe]
        %v2609 = vunpack.c.l.b16 %v2607
        %v2610 = vpack.c.b16 %v2028, %v2609
        %v2611 = vrot.slane %v2610, 1
        %v2612 = vrot.slane %v2056, 1
        %v2613 = vsel %vm840, %v2611, %v2612
        %v2614 = vrot.slane %v2057, 1
        %v2615 = vsel %vm840, %v2612, %v2614
        %v2616 = vrot.slane %v2058, 1
        %v2617 = vsel %vm840, %v2614, %v2616
        %v2618 = vrot.slane %v2059, 1
        %v2619 = vsel %vm840, %v2616, %v2618
        %v2620 = vrot.slane %v2060, 1
        %v2621 = vsel %vm840, %v2618, %v2620
        %v2622 = vrot.slane %v2061, 1
        %v2623 = vsel %vm840, %v2620, %v2622
        %v2624 = vrot.slane %v2062, 1
        %v2625 = vsel %vm840, %v2622, %v2624
        %v2626 = vrot.slane %v2063, 1
        %v2627 = vsel %vm840, %v2624, %v2626
        %v2628 = vrot.slane %v2064, 1
        %v2629 = vsel %vm840, %v2626, %v2628
        %v2630 = vrot.slane %v2065, 1
        %v2631 = vsel %vm840, %v2628, %v2630
        %v2632 = vrot.slane %v2066, 1
        %v2633 = vsel %vm840, %v2630, %v2632
        %v2634 = vrot.slane %v2067, 1
        %v2635 = vsel %vm840, %v2632, %v2634
        %v2636 = vrot.slane %v2290, 1
        %v2637 = vsel %vm840, %v2634, %v2636
        %v2639 = vsel %vm295, %v2613, 0
        %v2642 = vsel %vm295, %v2615, 0
        %v2645 = vsel %vm295, %v2617, 0
        %v2648 = vsel %vm295, %v2619, 0
        %v2651 = vsel %vm295, %v2621, 0
        %v2654 = vsel %vm295, %v2623, 0
        %v2657 = vsel %vm295, %v2625, 0
        %v2660 = vsel %vm295, %v2627, 0
        %v2663 = vsel %vm295, %v2629, 0
        %v2666 = vsel %vm295, %v2631, 0
        %v2669 = vsel %vm295, %v2633, 0
        %v2672 = vsel %vm295, %v2635, 0
        %v2675 = vsel %vm295, %v2637, 0
        %v2678 = vsel %vm295, %v2636, 0
        %v2681 = vsel %vm338, %v190, 0
        %2683 = vmatprep.subr.bf16.mxu0 0
        %2684 = vmatpush1.bf16.msra.mxu0 %v2681
        %2685 = vmatprep.subr.bf16.mxu0 0
        %2686 = vmatpush1.bf16.msra.mxu0 0
        %2687 = vmatprep.subr.bf16.mxu0 0
        %2688 = vmatpush1.bf16.msra.mxu0 0
        %2689 = vmatprep.subr.bf16.mxu0 0
        %2690 = vmatpush1.bf16.msra.mxu0 0
        %2691 = vmatprep.subr.bf16.mxu0 0
        %2692 = vmatpush1.bf16.msra.mxu0 0
        %2693 = vmatprep.subr.bf16.mxu0 0
        %2694 = vmatpush1.bf16.msra.mxu0 0
        %2695 = vmatprep.subr.bf16.mxu0 0
        %2696 = vmatpush1.bf16.msra.mxu0 0
        %2697 = vmatprep.subr.bf16.mxu0 0
        %2698 = vmatpush1.bf16.msra.mxu0 0
        %2699 = vmatprep.subr.bf16.mxu0 0
        %2700 = vmatpush1.bf16.msra.mxu0 0
        %2701 = vmatprep.subr.bf16.mxu0 0
        %2702 = vmatpush1.bf16.msra.mxu0 0
        %2703 = vmatprep.subr.bf16.mxu0 0
        %2704 = vmatpush1.bf16.msra.mxu0 0
        %2705 = vmatprep.subr.bf16.mxu0 0
        %2706 = vmatpush1.bf16.msra.mxu0 0
        %2707 = vmatprep.subr.bf16.mxu0 0
        %2708 = vmatpush1.bf16.msra.mxu0 0
        %2709 = vmatprep.subr.bf16.mxu0 0
        %2710 = vmatpush1.bf16.msra.mxu0 0
        %2711 = vmatprep.subr.bf16.mxu0 0
        %2712 = vmatpush1.bf16.msra.mxu0 0
        %2713 = vmatprep.subr.bf16.mxu0 0
        %2714 = vmatpush1.bf16.msra.mxu0 0
        %2715 = vmatprep.mubr.bf16.mxu0 0
        %2716 = vmatmul.mubr.bf16.gmra.mrb[0].mxu0 %v2639
        %v2717 = vpop.f32.mrb[0].mxu0
        %v2718 = vadd.f32 0.0, %v2717
        %v2719 = vpop.f32.mrb[0].mxu0
        %v2720 = vpop.f32.mrb[0].mxu0
        %v2721 = vadd.f32 0.0, %v2720
        %v2722 = vpop.f32.mrb[0].mxu0
        %2723 = vmatprep.mubr.bf16.mxu0 0
        %2724 = vmatmul.mubr.bf16.gmra.mrb[0].mxu0 %v2642
        %v2725 = vpop.f32.mrb[0].mxu0
        %v2726 = vadd.f32 0.0, %v2725
        %v2727 = vpop.f32.mrb[0].mxu0
        %v2728 = vpop.f32.mrb[0].mxu0
        %v2729 = vadd.f32 0.0, %v2728
        %v2730 = vpop.f32.mrb[0].mxu0
        %2731 = vmatprep.mubr.bf16.mxu0 0
        %2732 = vmatmul.mubr.bf16.gmra.mrb[0].mxu0 %v2645
        %v2733 = vpop.f32.mrb[0].mxu0
        %v2734 = vadd.f32 0.0, %v2733
        %v2735 = vpop.f32.mrb[0].mxu0
        %v2736 = vpop.f32.mrb[0].mxu0
        %v2737 = vadd.f32 0.0, %v2736
        %v2738 = vpop.f32.mrb[0].mxu0
        %2739 = vmatprep.mubr.bf16.mxu0 0
        %2740 = vmatmul.mubr.bf16.gmra.mrb[0].mxu0 %v2648
        %v2741 = vpop.f32.mrb[0].mxu0
        %v2742 = vadd.f32 0.0, %v2741
        %v2743 = vpop.f32.mrb[0].mxu0
        %v2744 = vpop.f32.mrb[0].mxu0
        %v2745 = vadd.f32 0.0, %v2744
        %v2746 = vpop.f32.mrb[0].mxu0
        %2747 = vmatprep.mubr.bf16.mxu0 0
        %2748 = vmatmul.mubr.bf16.gmra.mrb[0].mxu0 %v2651
        %v2749 = vpop.f32.mrb[0].mxu0
        %v2750 = vadd.f32 0.0, %v2749
        %v2751 = vpop.f32.mrb[0].mxu0
        %v2752 = vpop.f32.mrb[0].mxu0
        %v2753 = vadd.f32 0.0, %v2752
        %v2754 = vpop.f32.mrb[0].mxu0
        %2755 = vmatprep.mubr.bf16.mxu0 0
        %2756 = vmatmul.mubr.bf16.gmra.mrb[0].mxu0 %v2654
        %v2757 = vpop.f32.mrb[0].mxu0
        %v2758 = vadd.f32 0.0, %v2757
        %v2759 = vpop.f32.mrb[0].mxu0
        %v2760 = vpop.f32.mrb[0].mxu0
        %v2761 = vadd.f32 0.0, %v2760
        %v2762 = vpop.f32.mrb[0].mxu0
        %2763 = vmatprep.mubr.bf16.mxu0 0
        %2764 = vmatmul.mubr.bf16.gmra.mrb[0].mxu0 %v2657
        %v2765 = vpop.f32.mrb[0].mxu0
        %v2766 = vadd.f32 0.0, %v2765
        %v2767 = vpop.f32.mrb[0].mxu0
        %v2768 = vpop.f32.mrb[0].mxu0
        %v2769 = vadd.f32 0.0, %v2768
        %v2770 = vpop.f32.mrb[0].mxu0
        %2771 = vmatprep.mubr.bf16.mxu0 0
        %2772 = vmatmul.mubr.bf16.gmra.mrb[0].mxu0 %v2660
        %v2773 = vpop.f32.mrb[0].mxu0
        %v2774 = vadd.f32 0.0, %v2773
        %v2775 = vpop.f32.mrb[0].mxu0
        %v2776 = vpop.f32.mrb[0].mxu0
        %v2777 = vadd.f32 0.0, %v2776
        %v2778 = vpop.f32.mrb[0].mxu0
        %2779 = vmatprep.mubr.bf16.mxu0 0
        %2780 = vmatmul.mubr.bf16.gmra.mrb[0].mxu0 %v2663
        %v2781 = vpop.f32.mrb[0].mxu0
        %v2782 = vadd.f32 0.0, %v2781
        %v2783 = vpop.f32.mrb[0].mxu0
        %v2784 = vpop.f32.mrb[0].mxu0
        %v2785 = vadd.f32 0.0, %v2784
        %v2786 = vpop.f32.mrb[0].mxu0
        %2787 = vmatprep.mubr.bf16.mxu0 0
        %2788 = vmatmul.mubr.bf16.gmra.mrb[0].mxu0 %v2666
        %v2789 = vpop.f32.mrb[0].mxu0
        %v2790 = vadd.f32 0.0, %v2789
        %v2791 = vpop.f32.mrb[0].mxu0
        %v2792 = vpop.f32.mrb[0].mxu0
        %v2793 = vadd.f32 0.0, %v2792
        %v2794 = vpop.f32.mrb[0].mxu0
        %2795 = vmatprep.mubr.bf16.mxu0 0
        %2796 = vmatmul.mubr.bf16.gmra.mrb[0].mxu0 %v2669
        %v2797 = vpop.f32.mrb[0].mxu0
        %v2798 = vadd.f32 0.0, %v2797
        %v2799 = vpop.f32.mrb[0].mxu0
        %v2800 = vpop.f32.mrb[0].mxu0
        %v2801 = vadd.f32 0.0, %v2800
        %v2802 = vpop.f32.mrb[0].mxu0
        %2803 = vmatprep.mubr.bf16.mxu0 0
        %2804 = vmatmul.mubr.bf16.gmra.mrb[0].mxu0 %v2672
        %v2805 = vpop.f32.mrb[0].mxu0
        %v2806 = vadd.f32 0.0, %v2805
        %v2807 = vpop.f32.mrb[0].mxu0
        %v2808 = vpop.f32.mrb[0].mxu0
        %v2809 = vadd.f32 0.0, %v2808
        %v2810 = vpop.f32.mrb[0].mxu0
        %2811 = vmatprep.mubr.bf16.mxu0 0
        %2812 = vmatmul.mubr.bf16.gmra.mrb[0].mxu0 %v2675
        %v2813 = vpop.f32.mrb[0].mxu0
        %v2814 = vadd.f32 0.0, %v2813
        %v2815 = vpop.f32.mrb[0].mxu0
        %v2816 = vpop.f32.mrb[0].mxu0
        %v2817 = vadd.f32 0.0, %v2816
        %v2818 = vpop.f32.mrb[0].mxu0
        %2819 = vmatprep.mubr.bf16.mxu0 0
        %2820 = vmatmul.mubr.bf16.gmra.mrb[0].mxu0 %v2678
        %v2821 = vpop.f32.mrb[0].mxu0
        %v2822 = vadd.f32 0.0, %v2821
        %v2823 = vpop.f32.mrb[0].mxu0
        %v2824 = vpop.f32.mrb[0].mxu0
        %v2825 = vadd.f32 0.0, %v2824
        %v2826 = vpop.f32.mrb[0].mxu0
        %2827 = vdwg.mxu0
        %v2828 = vadd.f32 %v2579, %v2718
        %v2829 = vadd.f32 %v2580, %v2721
        %v2830 = vadd.f32 %v2581, %v2726
        %v2831 = vadd.f32 %v2582, %v2729
        %v2832 = vadd.f32 %v2583, %v2734
        %v2833 = vadd.f32 %v2584, %v2737
        %v2834 = vadd.f32 %v2585, %v2742
        %v2835 = vadd.f32 %v2586, %v2745
        %v2836 = vadd.f32 %v2587, %v2750
        %v2837 = vadd.f32 %v2588, %v2753
        %v2838 = vadd.f32 %v2589, %v2758
        %v2839 = vadd.f32 %v2590, %v2761
        %v2840 = vadd.f32 %v2591, %v2766
        %v2841 = vadd.f32 %v2592, %v2769
        %v2842 = vadd.f32 %v2593, %v2774
        %v2843 = vadd.f32 %v2594, %v2777
        %v2844 = vadd.f32 %v2595, %v2782
        %v2845 = vadd.f32 %v2596, %v2785
        %v2846 = vadd.f32 %v2597, %v2790
        %v2847 = vadd.f32 %v2598, %v2793
        %v2848 = vadd.f32 %v2599, %v2798
        %v2849 = vadd.f32 %v2600, %v2801
        %v2850 = vadd.f32 %v2601, %v2806
        %v2851 = vadd.f32 %v2602, %v2809
        %v2852 = vadd.f32 %v2603, %v2814
        %v2853 = vadd.f32 %v2604, %v2817
        %v2854 = vadd.f32 %v2605, %v2822
        %v2855 = vadd.f32 %v2606, %v2825
        %v2856 = vpack.c.bf16 %v2829, %v2828
        %v2857 = vpack.c.bf16 %v2831, %v2830
        %v2858 = vpack.c.bf16 %v2833, %v2832
        %v2859 = vpack.c.bf16 %v2835, %v2834
        %v2860 = vpack.c.bf16 %v2837, %v2836
        %v2861 = vpack.c.bf16 %v2839, %v2838
        %v2862 = vpack.c.bf16 %v2841, %v2840
        %v2863 = vpack.c.bf16 %v2843, %v2842
        %v2864 = vpack.c.bf16 %v2845, %v2844
        %v2865 = vpack.c.bf16 %v2847, %v2846
        %v2866 = vpack.c.bf16 %v2849, %v2848
        %v2867 = vpack.c.bf16 %v2851, %v2850
        %v2868 = vpack.c.bf16 %v2853, %v2852
        %v2869 = vpack.c.bf16 %v2855, %v2854
        %v2884 = vunpack.c.l.b16 %v2856
        %v2885 = vunpack.c.h.b16 %v2856
        %v2886 = vunpack.c.l.b16 %v2857
        %v2887 = vunpack.c.h.b16 %v2857
        %v2888 = vunpack.c.l.b16 %v2858
        %v2889 = vunpack.c.h.b16 %v2858
        %v2890 = vunpack.c.l.b16 %v2859
        %v2891 = vunpack.c.h.b16 %v2859
        %v2892 = vunpack.c.l.b16 %v2860
        %v2893 = vunpack.c.h.b16 %v2860
        %v2894 = vunpack.c.l.b16 %v2861
        %v2895 = vunpack.c.h.b16 %v2861
        %v2896 = vunpack.c.l.b16 %v2862
        %v2897 = vunpack.c.h.b16 %v2862
        %v2898 = vunpack.c.l.b16 %v2863
        %v2899 = vunpack.c.h.b16 %v2863
        %v2900 = vunpack.c.l.b16 %v2864
        %v2901 = vunpack.c.h.b16 %v2864
        %v2902 = vunpack.c.l.b16 %v2865
        %v2903 = vunpack.c.h.b16 %v2865
        %v2904 = vunpack.c.l.b16 %v2866
        %v2905 = vunpack.c.h.b16 %v2866
        %v2906 = vunpack.c.l.b16 %v2867
        %v2907 = vunpack.c.h.b16 %v2867
        %v2908 = vunpack.c.l.b16 %v2868
        %v2909 = vunpack.c.h.b16 %v2868
        %v2910 = vunpack.c.l.b16 %v2869
        %v2911 = vunpack.c.h.b16 %v2869
        %v2912 = vpack.c.b16 %v2884, %v2884
        %v2913 = vpack.c.b16 %v2885, %v2885
        %v2914 = vpack.c.b16 %v2886, %v2886
        %v2915 = vpack.c.b16 %v2887, %v2887
        %v2916 = vpack.c.b16 %v2888, %v2888
        %v2917 = vpack.c.b16 %v2889, %v2889
        %v2918 = vpack.c.b16 %v2890, %v2890
        %v2919 = vpack.c.b16 %v2891, %v2891
        %v2920 = vpack.c.b16 %v2892, %v2892
        %v2921 = vpack.c.b16 %v2893, %v2893
        %v2922 = vpack.c.b16 %v2894, %v2894
        %v2923 = vpack.c.b16 %v2895, %v2895
        %v2924 = vpack.c.b16 %v2896, %v2896
        %v2925 = vpack.c.b16 %v2897, %v2897
        %v2926 = vpack.c.b16 %v2898, %v2898
        %v2927 = vpack.c.b16 %v2899, %v2899
        %v2928 = vpack.c.b16 %v2900, %v2900
        %v2929 = vpack.c.b16 %v2901, %v2901
        %v2930 = vpack.c.b16 %v2902, %v2902
        %v2931 = vpack.c.b16 %v2903, %v2903
        %v2932 = vpack.c.b16 %v2904, %v2904
        %v2933 = vpack.c.b16 %v2905, %v2905
        %v2934 = vpack.c.b16 %v2906, %v2906
        %v2935 = vpack.c.b16 %v2907, %v2907
        %v2936 = vpack.c.b16 %v2908, %v2908
        %v2937 = vpack.c.b16 %v2909, %v2909
        %v2938 = vpack.c.b16 %v2910, %v2910
        %v2939 = vpack.c.b16 %v2911, %v2911
        %2968 = vst [vmem:[%s164] sm:$0xf] %v2912
        %2969 = vst [vmem:[%s164 + $0x4] sm:$0xf] %v2913
        %2970 = vst [vmem:[%s164 + $0x8] sm:$0xf] %v2914
        %2971 = vst [vmem:[%s164 + $0xc] sm:$0xf] %v2915
        %2972 = vst [vmem:[%s164 + $0x10] sm:$0xf] %v2916
        %2973 = vst [vmem:[%s164 + $0x14] sm:$0xf] %v2917
        %2974 = vst [vmem:[%s164 + $0x18] sm:$0xf] %v2918
        %2975 = vst [vmem:[%s164 + $0x1c] sm:$0xf] %v2919
        %2976 = vst [vmem:[%s164 + $0x20] sm:$0xf] %v2920
        %2977 = vst [vmem:[%s164 + $0x24] sm:$0xf] %v2921
        %2978 = vst [vmem:[%s164 + $0x28] sm:$0xf] %v2922
        %2979 = vst [vmem:[%s164 + $0x2c] sm:$0xf] %v2923
        %2980 = vst [vmem:[%s164 + $0x30] sm:$0xf] %v2924
        %2981 = vst [vmem:[%s164 + $0x34] sm:$0xf] %v2925
        %2982 = vst [vmem:[%s164 + $0x38] sm:$0xf] %v2926
        %2983 = vst [vmem:[%s164 + $0x3c] sm:$0xf] %v2927
        %2984 = vst [vmem:[%s164 + $0x40] sm:$0xf] %v2928
        %2985 = vst [vmem:[%s164 + $0x44] sm:$0xf] %v2929
        %2986 = vst [vmem:[%s164 + $0x48] sm:$0xf] %v2930
        %2987 = vst [vmem:[%s164 + $0x4c] sm:$0xf] %v2931
        %2988 = vst [vmem:[%s164 + $0x50] sm:$0xf] %v2932
        %2989 = vst [vmem:[%s164 + $0x54] sm:$0xf] %v2933
        %2990 = vst [vmem:[%s164 + $0x58] sm:$0xf] %v2934
        %2991 = vst [vmem:[%s164 + $0x5c] sm:$0xf] %v2935
        %2992 = vst [vmem:[%s164 + $0x60] sm:$0xf] %v2936
        %2993 = vst [vmem:[%s164 + $0x64] sm:$0xf] %v2937
        %2994 = vst [vmem:[%s164 + $0x68] sm:$0xf] %v2938
        %2995 = vst [vmem:[%s164 + $0x6c] sm:$0x7] %v2939
        %s2996 = sand.u32 %s93, 1
        %s2997 = scalar_lea.sflag [#allocation3], %s2996
        %s2998 = sand.u32 %s93, 1
        %s2999 = smul.addr %s2998, 128
        %s3000 = scalar_lea.vmem [#allocation2], %s2999
        // Predicated region
        $region33: #{tpu_custom_call.1} parent=31 // pred_check
          %p3001 = pneg %p103
        $region34: #{tpu_custom_call.1} parent=31 // pred_check_branch
          %3003 = sbr.rel (%p3001) target = $region36
        $region35: #{tpu_custom_call.1} parent=31 // pred_region
          %s3004 = smul.u32 32, %s17
          %s3006 = ssub.s32 2048, 2048
          %3007 = vsyncadd %s2997, %s3006
          %s3008 = smul.addr %s3004, 64
          %s3009 = scalar_lea.hbm %s3, %s3008
          %s3010 = sshll.u32 %s3000, 4
          %s3011 = int_to_ptr.vmem [resolvable:$true] %s3010
          %3016 = dma.vmem_to_hbm [thread:$0]  %s3011, 2048, %s3009, %s2997, 64, 64, 4
        $region36: #{tpu_custom_call.1} parent=31 // pred_fallthru
          _
      $region32: #{tpu_custom_call.1} parent=5 // pred_fallthru
        _
      %p3017 = scmp.le.s32.totalorder 2, %s12
      // Predicated region
      $region37: #{tpu_custom_call.1} parent=5 // pred_check
        %p3018 = pneg %p3017
      $region38: #{tpu_custom_call.1} parent=5 // pred_check_branch
        %3020 = sbr.rel (%p3018) target = $region40
      $region39: #{tpu_custom_call.1} parent=5 // pred_region
        %s3021 = ssub.s32 %s12, 2
        // Predicated region
        $region41: #{tpu_custom_call.1} parent=39 // pred_check
          %p3022 = pneg %p109
        $region42: #{tpu_custom_call.1} parent=39 // pred_check_branch
          %3024 = sbr.rel (%p3022) target = $region44
        $region43: #{tpu_custom_call.1} parent=39 // pred_region
          %s3025 = sand.u32 %s94, 1
          %s3026 = scalar_lea.sflag [#allocation3], %s3025
          %s3027 = sand.u32 %s94, 1
          %s3028 = smul.addr %s3027, 128
          %s3029 = scalar_lea.vmem [#allocation2], %s3028
          %3030 = dma.done %s3026, 2048
        $region44: #{tpu_custom_call.1} parent=39 // pred_fallthru
          _
      $region40: #{tpu_custom_call.1} parent=5 // pred_fallthru
        _
    $region6: #{tpu_custom_call.1} parent=1 // loop_footer
      %s16 = sadd.s32 1, %s12
    $region7: #{tpu_custom_call.1} parent=1 // loop_footer_branch
      %11 = sbr.rel target = $region3
    $region8: #{tpu_custom_call.1} parent=1 // loop_exit
      _
    %3031 = vsyncpa [#allocation3], 1
    %s3032 = scalar_lea.sflag [#allocation3], 1
    %3033 = vsyncpa %s3032, 1

</llo_original>
